<compile_context>
chip_gen: v7x
topology: tpu7x:2x2x1
jax: 0.10.0
libtpu: 0.0.40
codegen_flags: <defaults>
</compile_context>

<pallas_src>
import functools

import jax
import jax.numpy as jnp
from jax.experimental import pallas as pl
from jax.experimental.pallas import tpu as pltpu

LANE = 128
SUBLANE = 8


def _round_up(n, m):
    return ((n + m - 1) // m) * m


# ----------------------------- Pallas kernel ------------------------------ #
def _cvae_kernel(x_ref, cond_ref, eps_ref,
                 w_e0_ref, w_e1_ref, w_hd_ref, w_d0_ref, w_d1_ref, w_do_ref,
                 b_e0_ref, b_e1_ref, b_hd_ref, b_d0_ref, b_d1_ref, b_do_ref,
                 recon_ref, mulv_ref, *, Pz):
    """One batch tile of the full CVAE forward.

    All weight blocks are bf16 and zero-padded per-dimension to lane multiples;
    biases are f32.  mu|logvar head is a single fused [Ph1, 2*Pz] matmul whose
    packed result is also emitted as one lane-dense [tm, 2*Pz] output.
    """
    f32 = jnp.float32
    bf16 = jnp.bfloat16
    dot = lambda a, b: jnp.dot(a, b, preferred_element_type=f32)
    relu = lambda v: jnp.maximum(v, 0.0)  # activation_fn = nn.ReLU()

    x = x_ref[...]          # bf16 [tm, Pi]
    cond = cond_ref[...]    # bf16 [tm, Pc]
    eps = eps_ref[...]      # f32  [tm, Pz]

    # ---- encoder: Linear -> ReLU -> Linear -> ReLU ----
    h = relu(dot(x, w_e0_ref[...]) + b_e0_ref[...])                       # [tm, Ph0] f32
    h = relu(dot(h.astype(bf16), w_e1_ref[...]) + b_e1_ref[...])          # [tm, Ph1] f32

    # ---- fused mu / logvar head: one [Ph1, 2*Pz] matmul ----
    mulv = dot(h.astype(bf16), w_hd_ref[...]) + b_hd_ref[...]             # [tm, 2Pz] f32
    mu = mulv[:, :Pz]
    logvar = mulv[:, Pz:]

    # ---- reparameterize: z = mu + eps * exp(0.5 * logvar)  (exp -> EUP) ----
    # Padded lanes: logvar==0 -> exp==1, eps==0 -> z padded lanes stay 0.
    z = mu + eps * jnp.exp(0.5 * logvar)                                  # [tm, Pz] f32

    # ---- decoder: fused cat(z, cond) @ W_d0 (single K = Pz + Pc MXU pass) ----
    zc = jnp.concatenate([z.astype(bf16), cond], axis=1)                  # [tm, Pz+Pc]
    d = relu(dot(zc, w_d0_ref[...]) + b_d0_ref[...])                      # [tm, Ph1] f32
    d = relu(dot(d.astype(bf16), w_d1_ref[...]) + b_d1_ref[...])          # [tm, Ph0] f32
    recon = dot(d.astype(bf16), w_do_ref[...]) + b_do_ref[...]            # [tm, Pi]  f32

    recon_ref[...] = recon
    mulv_ref[...] = mulv


# --------------------------- params init & pack ---------------------------- #
def init_cvae_params(key, input_dim, latent_dim, condition_dim, hidden_dims):
    """Deterministic init mimicking torch nn.Linear default (U[-1/sqrt(fan_in), +])."""
    params = {}

    def linear(key, fan_in, fan_out, name):
        kw, kb = jax.random.split(key)
        bound = 1.0 / jnp.sqrt(fan_in)
        params[name + "_w"] = jax.random.uniform(
            kw, (fan_in, fan_out), jnp.float32, -bound, bound)
        params[name + "_b"] = jax.random.uniform(
            kb, (1, fan_out), jnp.float32, -bound, bound)

    keys = jax.random.split(key, 8)
    h0, h1 = hidden_dims
    linear(keys[0], input_dim, h0, "e0")
    linear(keys[1], h0, h1, "e1")
    linear(keys[2], h1, latent_dim, "mu")
    linear(keys[3], h1, latent_dim, "lv")
    # decoder first layer takes cat(z, condition); store as two weight blocks
    kw, kb = jax.random.split(keys[4])
    fan_in = latent_dim + condition_dim
    bound = 1.0 / jnp.sqrt(fan_in)
    w_full = jax.random.uniform(kw, (fan_in, h1), jnp.float32, -bound, bound)
    params["d0z_w"] = w_full[:latent_dim]
    params["d0c_w"] = w_full[latent_dim:]
    params["d0_b"] = jax.random.uniform(kb, (1, h1), jnp.float32, -bound, bound)
    linear(keys[5], h1, h0, "d1")
    linear(keys[6], h0, input_dim, "do")
    return params


def pack_cvae_params(params, input_dim, latent_dim, condition_dim, hidden_dims):
    """Per-dimension zero-padding to 128 multiples; weights bf16, biases f32."""
    # TODO(synk): kernel hard-codes exactly 2 hidden layers (matches the test
    # config); generalize by emitting one dot per hidden layer.
    assert len(hidden_dims) == 2
    h0, h1 = hidden_dims
    Pi = _round_up(input_dim, LANE)
    Pc = _round_up(condition_dim, LANE)
    Pz = _round_up(latent_dim, LANE)
    Ph0 = _round_up(h0, LANE)
    Ph1 = _round_up(h1, LANE)

    bf16 = jnp.bfloat16

    def pad_w(w, rows, cols):
        out = jnp.zeros((rows, cols), bf16)
        return out.at[:w.shape[0], :w.shape[1]].set(w.astype(bf16))

    def pad_b(b, cols):
        out = jnp.zeros((1, cols), jnp.float32)
        return out.at[:, :b.shape[1]].set(b)

    # Fused mu|logvar head: [Ph1, 2*Pz]; mu cols [0:latent], logvar cols [Pz:Pz+latent].
    w_hd = jnp.zeros((Ph1, 2 * Pz), bf16)
    w_hd = w_hd.at[:h1, :latent_dim].set(params["mu_w"].astype(bf16))
    w_hd = w_hd.at[:h1, Pz:Pz + latent_dim].set(params["lv_w"].astype(bf16))
    b_hd = jnp.zeros((1, 2 * Pz), jnp.float32)
    b_hd = b_hd.at[:, :latent_dim].set(params["mu_b"])
    b_hd = b_hd.at[:, Pz:Pz + latent_dim].set(params["lv_b"])

    # Fused decoder-first weight: rows = [z block (Pz) | cond block (Pc)].
    w_d0 = jnp.zeros((Pz + Pc, Ph1), bf16)
    w_d0 = w_d0.at[:latent_dim, :h1].set(params["d0z_w"].astype(bf16))
    w_d0 = w_d0.at[Pz:Pz + condition_dim, :h1].set(params["d0c_w"].astype(bf16))

    packed = dict(
        w_e0=pad_w(params["e0_w"], Pi, Ph0), b_e0=pad_b(params["e0_b"], Ph0),
        w_e1=pad_w(params["e1_w"], Ph0, Ph1), b_e1=pad_b(params["e1_b"], Ph1),
        w_hd=w_hd, b_hd=b_hd,
        w_d0=w_d0, b_d0=pad_b(params["d0_b"], Ph1),
        w_d1=pad_w(params["d1_w"], Ph1, Ph0), b_d1=pad_b(params["d1_b"], Ph0),
        w_do=pad_w(params["do_w"], Ph0, Pi), b_do=pad_b(params["do_b"], Pi),
    )
    dims = dict(Pi=Pi, Pc=Pc, Pz=Pz, Ph0=Ph0, Ph1=Ph1)
    return packed, dims


# ------------------------------ JAX wrapper -------------------------------- #
def _resident_spec(block_shape):
    """Grid-resident operand: constant index_map, single-buffered if supported."""
    index_map = lambda i, _shape=block_shape: (0,) * len(_shape)
    try:
        return pl.BlockSpec(block_shape, index_map, pipeline_mode=pl.Buffered(1))
    except Exception:  # older jax without pipeline_mode / Buffered
        return pl.BlockSpec(block_shape, index_map)


def _pad2(a, rows, cols, dtype):
    a = a.astype(dtype)
    if a.shape == (rows, cols):
        return a
    # TODO(synk): for very large batches, handle the batch remainder with a
    # masked last tile instead of materializing a padded copy through HBM.
    return jnp.pad(a, ((0, rows - a.shape[0]), (0, cols - a.shape[1])))


@functools.partial(
    jax.jit,
    static_argnames=("latent_dim", "Pi", "Pc", "Pz", "Ph0", "Ph1", "tm"))
def _cvae_forward_impl(x, condition, eps, packed, *,
                       latent_dim, Pi, Pc, Pz, Ph0, Ph1, tm):
    B, input_dim = x.shape
    B_pad = _round_up(B, tm)

    x_p = _pad2(x, B_pad, Pi, jnp.bfloat16)
    c_p = _pad2(condition, B_pad, Pc, jnp.bfloat16)
    e_p = _pad2(eps, B_pad, Pz, jnp.float32)

    grid = (B_pad // tm,)

    # ---- advisory cost estimate (per-dim padded problem size) ----
    gemm_terms = (Pi * Ph0 + Ph0 * Ph1 + Ph1 * 2 * Pz
                  + (Pz + Pc) * Ph1 + Ph1 * Ph0 + Ph0 * Pi)
    w_bytes = 2 * gemm_terms                                   # bf16 weights
    b_bytes = 4 * (Ph0 + Ph1 + 2 * Pz + Ph1 + Ph0 + Pi)        # f32 biases
    io_bytes = B_pad * (2 * Pi + 2 * Pc + 4 * Pz               # x, cond, eps
                        + 4 * Pi + 4 * 2 * Pz)                 # recon, mu|logvar
    cost = pl.CostEstimate(flops=2 * B_pad * gemm_terms,
                           transcendentals=B_pad * Pz,
                           bytes_accessed=w_bytes + b_bytes + io_bytes)

    # ---- explicit VMEM budget (resident slabs x2 safety + double-buffered
    #      batch tiles + headroom for in-kernel intermediates) ----
    tile_bytes = tm * (2 * Pi + 2 * Pc + 4 * Pz + 4 * Pi + 4 * 2 * Pz)
    inter_bytes = tm * 4 * (2 * Ph0 + 2 * Ph1 + 3 * Pz + Pc + Pi)
    vmem_limit = int(2 * (w_bytes + b_bytes) + 2 * tile_bytes
                     + inter_bytes + (8 << 20))
    vmem_limit = min(max(vmem_limit, 24 << 20), 64 << 20)      # valid on v7x

    recon_p, mulv_p = pl.pallas_call(
        functools.partial(_cvae_kernel, Pz=Pz),
        out_shape=(
            jax.ShapeDtypeStruct((B_pad, Pi), jnp.float32),
            jax.ShapeDtypeStruct((B_pad, 2 * Pz), jnp.float32),
        ),
        grid=grid,
        in_specs=[
            pl.BlockSpec((tm, Pi), lambda i: (i, 0)),          # x tile
            pl.BlockSpec((tm, Pc), lambda i: (i, 0)),          # condition tile
            pl.BlockSpec((tm, Pz), lambda i: (i, 0)),          # eps tile
            _resident_spec((Pi, Ph0)),                         # encoder L0 weight
            _resident_spec((Ph0, Ph1)),                        # encoder L1 weight
            _resident_spec((Ph1, 2 * Pz)),                     # fused mu|logvar weight
            _resident_spec((Pz + Pc, Ph1)),                    # fused decoder L0 weight
            _resident_spec((Ph1, Ph0)),                        # decoder L1 weight
            _resident_spec((Ph0, Pi)),                         # decoder out weight
            _resident_spec((1, Ph0)),                          # biases ...
            _resident_spec((1, Ph1)),
            _resident_spec((1, 2 * Pz)),
            _resident_spec((1, Ph1)),
            _resident_spec((1, Ph0)),
            _resident_spec((1, Pi)),
        ],
        out_specs=(
            pl.BlockSpec((tm, Pi), lambda i: (i, 0)),          # recon tile
            pl.BlockSpec((tm, 2 * Pz), lambda i: (i, 0)),      # packed mu|logvar tile
        ),
        compiler_params=pltpu.CompilerParams(
            dimension_semantics=("parallel",),
            vmem_limit_bytes=vmem_limit),
        cost_estimate=cost,
    )(x_p, c_p, e_p,
      packed["w_e0"], packed["w_e1"], packed["w_hd"],
      packed["w_d0"], packed["w_d1"], packed["w_do"],
      packed["b_e0"], packed["b_e1"], packed["b_hd"],
      packed["b_d0"], packed["b_d1"], packed["b_do"])

    recon = recon_p[:B, :input_dim]
    mu = mulv_p[:B, :latent_dim]
    logvar = mulv_p[:B, Pz:Pz + latent_dim]
    return recon, mu, logvar


def _choose_tm(B):
    """Batch tile: up to 512 rows, but keep >= 2 grid steps when the batch
    allows it (v7x dual-TC); tiny batches get one sublane-aligned tile."""
    if B <= 2 * SUBLANE:
        return _round_up(B, SUBLANE)
    return min(512, _round_up((B + 1) // 2, SUBLANE))


def cvae_forward(x, condition, eps, packed, dims, latent_dim):
    tm = _choose_tm(x.shape[0])
    return _cvae_forward_impl(x, condition, eps, packed,
                              latent_dim=latent_dim, tm=tm, **dims)


# ----------------------------- pure-JAX ref -------------------------------- #
def cvae_ref(x, condition, eps, params):
    relu = lambda v: jnp.maximum(v, 0.0)
    h = relu(x @ params["e0_w"] + params["e0_b"])
    h = relu(h @ params["e1_w"] + params["e1_b"])
    mu = h @ params["mu_w"] + params["mu_b"]
    logvar = h @ params["lv_w"] + params["lv_b"]
    z = mu + eps * jnp.exp(0.5 * logvar)
    combined_w = jnp.concatenate([params["d0z_w"], params["d0c_w"]], axis=0)
    combined = jnp.concatenate([z, condition], axis=1)
    d = relu(combined @ combined_w + params["d0_b"])
    d = relu(d @ params["d1_w"] + params["d1_b"])
    recon = d @ params["do_w"] + params["do_b"]
    return recon, mu, logvar


if __name__ == "__main__":
    # Small, module-consistent shapes (B=32 so the batch grid has 2 steps).
    B = 32
    input_dim = 16
    latent_dim = 8
    condition_dim = 4
    hidden_dims = [64, 32]          # activation_fn = ReLU

    key = jax.random.PRNGKey(0)
    k_params, k_x, k_c, k_eps = jax.random.split(key, 4)

    params = init_cvae_params(k_params, input_dim, latent_dim,
                              condition_dim, hidden_dims)
    packed, dims = pack_cvae_params(params, input_dim, latent_dim,
                                    condition_dim, hidden_dims)

    x = jax.random.normal(k_x, (B, input_dim), jnp.float32)
    condition = jax.random.normal(k_c, (B, condition_dim), jnp.float32)
    # reparameterize's torch.randn_like(std) -> pre-sampled noise fed to kernel
    eps = jax.random.normal(k_eps, (B, latent_dim), jnp.float32)

    recon, mu, logvar = cvae_forward(x, condition, eps, packed, dims, latent_dim)
    jax.block_until_ready((recon, mu, logvar))

    # Correctness check against pure-JAX f32 reference.  Tolerance loosened to
    # ~2e-2 because the kernel runs bf16 weights/activations on the MXU.
    r_ref, mu_ref_v, lv_ref_v = cvae_ref(x, condition, eps, params)
    assert jnp.allclose(recon, r_ref, atol=2e-2, rtol=2e-2)
    assert jnp.allclose(mu, mu_ref_v, atol=2e-2, rtol=2e-2)
    assert jnp.allclose(logvar, lv_ref_v, atol=2e-2, rtol=2e-2)

    print("KERNEL_OK")
</pallas_src>

<mosaic_0001>
module attributes {stable_mosaic.version = 11 : i64} {
  func.func @_cvae_kernel(%arg0: i32, %arg1: memref<16x128xbf16, #tpu.memory_space<vmem>>, %arg2: memref<16x128xbf16, #tpu.memory_space<vmem>>, %arg3: memref<16x128xf32, #tpu.memory_space<vmem>>, %arg4: memref<128x128xbf16, #tpu.memory_space<vmem>>, %arg5: memref<128x128xbf16, #tpu.memory_space<vmem>>, %arg6: memref<128x256xbf16, #tpu.memory_space<vmem>>, %arg7: memref<256x128xbf16, #tpu.memory_space<vmem>>, %arg8: memref<128x128xbf16, #tpu.memory_space<vmem>>, %arg9: memref<128x128xbf16, #tpu.memory_space<vmem>>, %arg10: memref<1x128xf32, #tpu.memory_space<vmem>>, %arg11: memref<1x128xf32, #tpu.memory_space<vmem>>, %arg12: memref<1x256xf32, #tpu.memory_space<vmem>>, %arg13: memref<1x128xf32, #tpu.memory_space<vmem>>, %arg14: memref<1x128xf32, #tpu.memory_space<vmem>>, %arg15: memref<1x128xf32, #tpu.memory_space<vmem>>, %arg16: memref<16x128xf32, #tpu.memory_space<vmem>>, %arg17: memref<16x256xf32, #tpu.memory_space<vmem>>) attributes {dimension_semantics = [#tpu.dimension_semantics<parallel>], iteration_bounds = array<i64: 2>, scalar_prefetch = 0 : i64, scratch_operands = 0 : i64, tpu.core_type = #tpu.core_type<tc>, window_params = [{transform_indices = @transform_0, window_bounds = array<i64: 16, 128>}, {transform_indices = @transform_1, window_bounds = array<i64: 16, 128>}, {transform_indices = @transform_2, window_bounds = array<i64: 16, 128>}, {pipeline_mode = #tpu.pipeline_mode<synchronous>, transform_indices = @transform_3, window_bounds = array<i64: 128, 128>}, {pipeline_mode = #tpu.pipeline_mode<synchronous>, transform_indices = @transform_4, window_bounds = array<i64: 128, 128>}, {pipeline_mode = #tpu.pipeline_mode<synchronous>, transform_indices = @transform_5, window_bounds = array<i64: 128, 256>}, {pipeline_mode = #tpu.pipeline_mode<synchronous>, transform_indices = @transform_6, window_bounds = array<i64: 256, 128>}, {pipeline_mode = #tpu.pipeline_mode<synchronous>, transform_indices = @transform_7, window_bounds = array<i64: 128, 128>}, {pipeline_mode = #tpu.pipeline_mode<synchronous>, transform_indices = @transform_8, window_bounds = array<i64: 128, 128>}, {pipeline_mode = #tpu.pipeline_mode<synchronous>, transform_indices = @transform_9, window_bounds = array<i64: 1, 128>}, {pipeline_mode = #tpu.pipeline_mode<synchronous>, transform_indices = @transform_10, window_bounds = array<i64: 1, 128>}, {pipeline_mode = #tpu.pipeline_mode<synchronous>, transform_indices = @transform_11, window_bounds = array<i64: 1, 256>}, {pipeline_mode = #tpu.pipeline_mode<synchronous>, transform_indices = @transform_12, window_bounds = array<i64: 1, 128>}, {pipeline_mode = #tpu.pipeline_mode<synchronous>, transform_indices = @transform_13, window_bounds = array<i64: 1, 128>}, {pipeline_mode = #tpu.pipeline_mode<synchronous>, transform_indices = @transform_14, window_bounds = array<i64: 1, 128>}, {transform_indices = @transform_15, window_bounds = array<i64: 16, 128>}, {transform_indices = @transform_16, window_bounds = array<i64: 16, 256>}]} {
    %c0 = arith.constant 0 : index
    %c0_0 = arith.constant 0 : index
    %0 = vector.load %arg1[%c0, %c0_0] : memref<16x128xbf16, #tpu.memory_space<vmem>>, vector<16x128xbf16>
    %c0_1 = arith.constant 0 : index
    %c0_2 = arith.constant 0 : index
    %1 = vector.load %arg2[%c0_1, %c0_2] : memref<16x128xbf16, #tpu.memory_space<vmem>>, vector<16x128xbf16>
    %c0_3 = arith.constant 0 : index
    %c0_4 = arith.constant 0 : index
    %2 = vector.load %arg3[%c0_3, %c0_4] : memref<16x128xf32, #tpu.memory_space<vmem>>, vector<16x128xf32>
    %c0_5 = arith.constant 0 : index
    %c0_6 = arith.constant 0 : index
    %3 = vector.load %arg4[%c0_5, %c0_6] : memref<128x128xbf16, #tpu.memory_space<vmem>>, vector<128x128xbf16>
    %cst = arith.constant dense<0.000000e+00> : vector<16x128xf32>
    %4 = tpu.matmul %0, %3, %cst {dimension_numbers = #tpu.dot_dimension_numbers<[1], [0], [0], [1], [0, 0, 1, 1], [], []>} : vector<16x128xbf16>, vector<128x128xbf16>, vector<16x128xf32> -> vector<16x128xf32>
    %c0_7 = arith.constant 0 : index
    %c0_8 = arith.constant 0 : index
    %5 = vector.load %arg10[%c0_7, %c0_8] : memref<1x128xf32, #tpu.memory_space<vmem>>, vector<1x128xf32>
    %6 = vector.broadcast %5 : vector<1x128xf32> to vector<16x128xf32>
    %7 = arith.addf %4, %6 : vector<16x128xf32>
    %cst_9 = arith.constant 0.000000e+00 : f32
    %8 = vector.broadcast %cst_9 : f32 to vector<16x128xf32>
    %9 = arith.maximumf %7, %8 : vector<16x128xf32>
    %10 = arith.truncf %9 : vector<16x128xf32> to vector<16x128xbf16>
    %c0_10 = arith.constant 0 : index
    %c0_11 = arith.constant 0 : index
    %11 = vector.load %arg5[%c0_10, %c0_11] : memref<128x128xbf16, #tpu.memory_space<vmem>>, vector<128x128xbf16>
    %cst_12 = arith.constant dense<0.000000e+00> : vector<16x128xf32>
    %12 = tpu.matmul %10, %11, %cst_12 {dimension_numbers = #tpu.dot_dimension_numbers<[1], [0], [0], [1], [0, 0, 1, 1], [], []>} : vector<16x128xbf16>, vector<128x128xbf16>, vector<16x128xf32> -> vector<16x128xf32>
    %c0_13 = arith.constant 0 : index
    %c0_14 = arith.constant 0 : index
    %13 = vector.load %arg11[%c0_13, %c0_14] : memref<1x128xf32, #tpu.memory_space<vmem>>, vector<1x128xf32>
    %14 = vector.broadcast %13 : vector<1x128xf32> to vector<16x128xf32>
    %15 = arith.addf %12, %14 : vector<16x128xf32>
    %cst_15 = arith.constant 0.000000e+00 : f32
    %16 = vector.broadcast %cst_15 : f32 to vector<16x128xf32>
    %17 = arith.maximumf %15, %16 : vector<16x128xf32>
    %18 = arith.truncf %17 : vector<16x128xf32> to vector<16x128xbf16>
    %c0_16 = arith.constant 0 : index
    %c0_17 = arith.constant 0 : index
    %19 = vector.load %arg6[%c0_16, %c0_17] : memref<128x256xbf16, #tpu.memory_space<vmem>>, vector<128x256xbf16>
    %cst_18 = arith.constant dense<0.000000e+00> : vector<16x256xf32>
    %20 = tpu.matmul %18, %19, %cst_18 {dimension_numbers = #tpu.dot_dimension_numbers<[1], [0], [0], [1], [0, 0, 1, 1], [], []>} : vector<16x128xbf16>, vector<128x256xbf16>, vector<16x256xf32> -> vector<16x256xf32>
    %c0_19 = arith.constant 0 : index
    %c0_20 = arith.constant 0 : index
    %21 = vector.load %arg12[%c0_19, %c0_20] : memref<1x256xf32, #tpu.memory_space<vmem>>, vector<1x256xf32>
    %22 = vector.broadcast %21 : vector<1x256xf32> to vector<16x256xf32>
    %23 = arith.addf %20, %22 : vector<16x256xf32>
    %24 = vector.extract_strided_slice %23 {offsets = [0, 0], sizes = [16, 128], strides = [1, 1]} : vector<16x256xf32> to vector<16x128xf32>
    %25 = vector.extract_strided_slice %23 {offsets = [0, 128], sizes = [16, 128], strides = [1, 1]} : vector<16x256xf32> to vector<16x128xf32>
    %cst_21 = arith.constant 5.000000e-01 : f32
    %26 = vector.broadcast %cst_21 : f32 to vector<16x128xf32>
    %27 = arith.mulf %26, %25 : vector<16x128xf32>
    %28 = math.exp %27 : vector<16x128xf32>
    %29 = arith.mulf %2, %28 : vector<16x128xf32>
    %30 = arith.addf %24, %29 : vector<16x128xf32>
    %31 = arith.truncf %30 : vector<16x128xf32> to vector<16x128xbf16>
    %32 = tpu.concatenate %31, %1 in 1 : vector<16x128xbf16>, vector<16x128xbf16> -> vector<16x256xbf16>
    %c0_22 = arith.constant 0 : index
    %c0_23 = arith.constant 0 : index
    %33 = vector.load %arg7[%c0_22, %c0_23] : memref<256x128xbf16, #tpu.memory_space<vmem>>, vector<256x128xbf16>
    %cst_24 = arith.constant dense<0.000000e+00> : vector<16x128xf32>
    %34 = tpu.matmul %32, %33, %cst_24 {dimension_numbers = #tpu.dot_dimension_numbers<[1], [0], [0], [1], [0, 0, 1, 1], [], []>} : vector<16x256xbf16>, vector<256x128xbf16>, vector<16x128xf32> -> vector<16x128xf32>
    %c0_25 = arith.constant 0 : index
    %c0_26 = arith.constant 0 : index
    %35 = vector.load %arg13[%c0_25, %c0_26] : memref<1x128xf32, #tpu.memory_space<vmem>>, vector<1x128xf32>
    %36 = vector.broadcast %35 : vector<1x128xf32> to vector<16x128xf32>
    %37 = arith.addf %34, %36 : vector<16x128xf32>
    %cst_27 = arith.constant 0.000000e+00 : f32
    %38 = vector.broadcast %cst_27 : f32 to vector<16x128xf32>
    %39 = arith.maximumf %37, %38 : vector<16x128xf32>
    %40 = arith.truncf %39 : vector<16x128xf32> to vector<16x128xbf16>
    %c0_28 = arith.constant 0 : index
    %c0_29 = arith.constant 0 : index
    %41 = vector.load %arg8[%c0_28, %c0_29] : memref<128x128xbf16, #tpu.memory_space<vmem>>, vector<128x128xbf16>
    %cst_30 = arith.constant dense<0.000000e+00> : vector<16x128xf32>
    %42 = tpu.matmul %40, %41, %cst_30 {dimension_numbers = #tpu.dot_dimension_numbers<[1], [0], [0], [1], [0, 0, 1, 1], [], []>} : vector<16x128xbf16>, vector<128x128xbf16>, vector<16x128xf32> -> vector<16x128xf32>
    %c0_31 = arith.constant 0 : index
    %c0_32 = arith.constant 0 : index
    %43 = vector.load %arg14[%c0_31, %c0_32] : memref<1x128xf32, #tpu.memory_space<vmem>>, vector<1x128xf32>
    %44 = vector.broadcast %43 : vector<1x128xf32> to vector<16x128xf32>
    %45 = arith.addf %42, %44 : vector<16x128xf32>
    %cst_33 = arith.constant 0.000000e+00 : f32
    %46 = vector.broadcast %cst_33 : f32 to vector<16x128xf32>
    %47 = arith.maximumf %45, %46 : vector<16x128xf32>
    %48 = arith.truncf %47 : vector<16x128xf32> to vector<16x128xbf16>
    %c0_34 = arith.constant 0 : index
    %c0_35 = arith.constant 0 : index
    %49 = vector.load %arg9[%c0_34, %c0_35] : memref<128x128xbf16, #tpu.memory_space<vmem>>, vector<128x128xbf16>
    %cst_36 = arith.constant dense<0.000000e+00> : vector<16x128xf32>
    %50 = tpu.matmul %48, %49, %cst_36 {dimension_numbers = #tpu.dot_dimension_numbers<[1], [0], [0], [1], [0, 0, 1, 1], [], []>} : vector<16x128xbf16>, vector<128x128xbf16>, vector<16x128xf32> -> vector<16x128xf32>
    %c0_37 = arith.constant 0 : index
    %c0_38 = arith.constant 0 : index
    %51 = vector.load %arg15[%c0_37, %c0_38] : memref<1x128xf32, #tpu.memory_space<vmem>>, vector<1x128xf32>
    %52 = vector.broadcast %51 : vector<1x128xf32> to vector<16x128xf32>
    %53 = arith.addf %50, %52 : vector<16x128xf32>
    %c0_39 = arith.constant 0 : index
    %c0_40 = arith.constant 0 : index
    %54 = vector.load %arg16[%c0_39, %c0_40] : memref<16x128xf32, #tpu.memory_space<vmem>>, vector<16x128xf32>
    tpu.vector_store %arg16[%c0_39, %c0_40], %53 {strides = array<i32>} : memref<16x128xf32, #tpu.memory_space<vmem>>, vector<16x128xf32>,
    %c0_41 = arith.constant 0 : index
    %c0_42 = arith.constant 0 : index
    %55 = vector.load %arg17[%c0_41, %c0_42] : memref<16x256xf32, #tpu.memory_space<vmem>>, vector<16x256xf32>
    tpu.vector_store %arg17[%c0_41, %c0_42], %23 {strides = array<i32>} : memref<16x256xf32, #tpu.memory_space<vmem>>, vector<16x256xf32>,
    return
  }
  func.func @transform_0(%arg0: i32) -> (i32, i32) {
    %c0_i32 = arith.constant 0 : i32
    %c0_i32_0 = arith.constant 0 : i32
    return %arg0, %c0_i32 : i32, i32
  }
  func.func @transform_1(%arg0: i32) -> (i32, i32) {
    %c0_i32 = arith.constant 0 : i32
    %c0_i32_0 = arith.constant 0 : i32
    return %arg0, %c0_i32 : i32, i32
  }
  func.func @transform_2(%arg0: i32) -> (i32, i32) {
    %c0_i32 = arith.constant 0 : i32
    %c0_i32_0 = arith.constant 0 : i32
    return %arg0, %c0_i32 : i32, i32
  }
  func.func @transform_3(%arg0: i32) -> (i32, i32) {
    %c0_i32 = arith.constant 0 : i32
    %c0_i32_0 = arith.constant 0 : i32
    %c0_i32_1 = arith.constant 0 : i32
    return %c0_i32, %c0_i32_0 : i32, i32
  }
  func.func @transform_4(%arg0: i32) -> (i32, i32) {
    %c0_i32 = arith.constant 0 : i32
    %c0_i32_0 = arith.constant 0 : i32
    %c0_i32_1 = arith.constant 0 : i32
    return %c0_i32, %c0_i32_0 : i32, i32
  }
  func.func @transform_5(%arg0: i32) -> (i32, i32) {
    %c0_i32 = arith.constant 0 : i32
    %c0_i32_0 = arith.constant 0 : i32
    %c0_i32_1 = arith.constant 0 : i32
    return %c0_i32, %c0_i32_0 : i32, i32
  }
  func.func @transform_6(%arg0: i32) -> (i32, i32) {
    %c0_i32 = arith.constant 0 : i32
    %c0_i32_0 = arith.constant 0 : i32
    %c0_i32_1 = arith.constant 0 : i32
    return %c0_i32, %c0_i32_0 : i32, i32
  }
  func.func @transform_7(%arg0: i32) -> (i32, i32) {
    %c0_i32 = arith.constant 0 : i32
    %c0_i32_0 = arith.constant 0 : i32
    %c0_i32_1 = arith.constant 0 : i32
    return %c0_i32, %c0_i32_0 : i32, i32
  }
  func.func @transform_8(%arg0: i32) -> (i32, i32) {
    %c0_i32 = arith.constant 0 : i32
    %c0_i32_0 = arith.constant 0 : i32
    %c0_i32_1 = arith.constant 0 : i32
    return %c0_i32, %c0_i32_0 : i32, i32
  }
  func.func @transform_9(%arg0: i32) -> (i32, i32) {
    %c0_i32 = arith.constant 0 : i32
    %c0_i32_0 = arith.constant 0 : i32
    %c0_i32_1 = arith.constant 0 : i32
    return %c0_i32, %c0_i32_0 : i32, i32
  }
  func.func @transform_10(%arg0: i32) -> (i32, i32) {
    %c0_i32 = arith.constant 0 : i32
    %c0_i32_0 = arith.constant 0 : i32
    %c0_i32_1 = arith.constant 0 : i32
    return %c0_i32, %c0_i32_0 : i32, i32
  }
  func.func @transform_11(%arg0: i32) -> (i32, i32) {
    %c0_i32 = arith.constant 0 : i32
    %c0_i32_0 = arith.constant 0 : i32
    %c0_i32_1 = arith.constant 0 : i32
    return %c0_i32, %c0_i32_0 : i32, i32
  }
  func.func @transform_12(%arg0: i32) -> (i32, i32) {
    %c0_i32 = arith.constant 0 : i32
    %c0_i32_0 = arith.constant 0 : i32
    %c0_i32_1 = arith.constant 0 : i32
    return %c0_i32, %c0_i32_0 : i32, i32
  }
  func.func @transform_13(%arg0: i32) -> (i32, i32) {
    %c0_i32 = arith.constant 0 : i32
    %c0_i32_0 = arith.constant 0 : i32
    %c0_i32_1 = arith.constant 0 : i32
    return %c0_i32, %c0_i32_0 : i32, i32
  }
  func.func @transform_14(%arg0: i32) -> (i32, i32) {
    %c0_i32 = arith.constant 0 : i32
    %c0_i32_0 = arith.constant 0 : i32
    %c0_i32_1 = arith.constant 0 : i32
    return %c0_i32, %c0_i32_0 : i32, i32
  }
  func.func @transform_15(%arg0: i32) -> (i32, i32) {
    %c0_i32 = arith.constant 0 : i32
    %c0_i32_0 = arith.constant 0 : i32
    return %arg0, %c0_i32 : i32, i32
  }
  func.func @transform_16(%arg0: i32) -> (i32, i32) {
    %c0_i32 = arith.constant 0 : i32
    %c0_i32_0 = arith.constant 0 : i32
    return %arg0, %c0_i32 : i32, i32
  }
}

</mosaic_0001>

<llo_original>
// kernel: _cvae_forward_impl.1
$region0: #{_cvae_forward_impl.1}
  #allocation0 [shape = 'u32[]', space=smem, size = 0x4, offset = 0x4, fixed_abs, tag = 'smem constant byte address 0x4 - core index']
  #allocation1 [shape = 'u32[144,128]{1,0:T(1,128)}', space=vmem, size = 0x12000, scoped, tag = 'internal scratch']
  %s0 = inlined_call_operand.vmem [shape: bf16[32,128], index: 0, kind: input, shape index: {}]
  %s1 = inlined_call_operand.vmem [shape: bf16[32,128], index: 1, kind: input, shape index: {}]
  %s2 = inlined_call_operand.vmem [shape: f32[32,128], index: 2, kind: input, shape index: {}]
  %s3 = inlined_call_operand.hbm [shape: bf16[128,128], index: 3, kind: input, shape index: {}]
  %s4 = inlined_call_operand.hbm [shape: bf16[128,128], index: 4, kind: input, shape index: {}]
  %s5 = inlined_call_operand.vmem [shape: bf16[128,256], index: 5, kind: input, shape index: {}]
  %s6 = inlined_call_operand.vmem [shape: bf16[256,128], index: 6, kind: input, shape index: {}]
  %s7 = inlined_call_operand.hbm [shape: bf16[128,128], index: 7, kind: input, shape index: {}]
  %s8 = inlined_call_operand.hbm [shape: bf16[128,128], index: 8, kind: input, shape index: {}]
  %s9 = inlined_call_operand.vmem [shape: f32[1,128], index: 9, kind: input, shape index: {}]
  %s10 = inlined_call_operand.vmem [shape: f32[1,128], index: 10, kind: input, shape index: {}]
  %s11 = inlined_call_operand.vmem [shape: f32[1,256], index: 11, kind: input, shape index: {}]
  %s12 = inlined_call_operand.hbm [shape: f32[1,128], index: 12, kind: input, shape index: {}]
  %s13 = inlined_call_operand.hbm [shape: f32[1,128], index: 13, kind: input, shape index: {}]
  %s14 = inlined_call_operand.vmem [shape: f32[1,128], index: 14, kind: input, shape index: {}]
  %s15 = inlined_call_operand.vmem [shape: f32[32,128], index: 15, kind: output, shape index: {0}]
  %s16 = inlined_call_operand.vmem [shape: f32[32,256], index: 16, kind: output, shape index: {1}]
  %17 = xla_tuple %s15, %s16
  %s18 = sld [smem:[#allocation0]]
  $region125: #{_cvae_forward_impl.1} parent=0
    _
  %s20 = ssub.s32 1, %s18
  %s21 = scalar_select 0, %s20, %s18
  $region1: #{_cvae_forward_impl.1} parent=0
    #allocation2 [shape = 'u8[32768]{0}', space=vmem, size = 0x8000, scoped, tag = 'input window, operand 3, single buffered']
    #allocation3 [shape = 's32[2]{0}', space=sflag, size = 0x8, scoped, tag = 'scoped memory for _cvae_forward_impl.1']
    #allocation4 [shape = 'u8[32768]{0}', space=vmem, size = 0x8000, scoped, tag = 'input window, operand 4, single buffered']
    #allocation5 [shape = 's32[1]{0}', space=sflag, size = 0x4, scoped, tag = 'scoped memory for _cvae_forward_impl.1']
    #allocation6 [shape = 'u8[32768]{0}', space=vmem, size = 0x8000, scoped, tag = 'input window, operand 7, single buffered']
    #allocation7 [shape = 'u8[32768]{0}', space=vmem, size = 0x8000, scoped, tag = 'input window, operand 8, single buffered']
    #allocation8 [shape = 's32[1]{0}', space=sflag, size = 0x4, scoped, tag = 'scoped memory for _cvae_forward_impl.1']
    #allocation9 [shape = 'u8[512]{0}', space=vmem, size = 0x400, scoped, tag = 'input window, operand 12, single buffered']
    #allocation10 [shape = 'u8[512]{0}', space=vmem, size = 0x400, scoped, tag = 'input window, operand 13, single buffered']
    #allocation11 [shape = 's32[1]{0}', space=sflag, size = 0x4, scoped, tag = 'scoped memory for _cvae_forward_impl.1']
    %22 = vsyncpa [#allocation3], 0
    %23 = vsyncpa [#allocation5], 0
    %24 = vsyncpa [#allocation8], 0
    %25 = vsyncpa [#allocation11], 0
    loop: start=0, step=1, limit=4
    $region2: #{_cvae_forward_impl.1} parent=1 // loop_pre_header
      _
    $region3: #{_cvae_forward_impl.1} parent=1 // loop_header
      %s27 = sphi 0, %s31
      %p28 = scmp.ge.s32.totalorder %s27, 4
      %s37 = sphi 0, %s39
      %s40 = sphi 0, %s37
      %s41 = sphi 0, %s40
      %s57 = sphi 0, %s41
      %s63 = sphi 0, %s65
      %s66 = sphi 0, %s63
      %s67 = sphi 0, %s66
      %s83 = sphi 0, %s67
      %s89 = sphi 0, %s91
      %s92 = sphi 0, %s89
      %s93 = sphi 0, %s92
      %s109 = sphi 0, %s93
      %s113 = sphi 0, %s113
      %s115 = sphi 0, %s113
      %s116 = sphi 0, %s115
      %s130 = sphi 0, %s116
      %s134 = sphi 0, %s134
      %s136 = sphi 0, %s134
      %s137 = sphi 0, %s136
      %s151 = sphi 0, %s137
      %s155 = sphi 0, %s155
      %s157 = sphi 0, %s155
      %s158 = sphi 0, %s157
      %s172 = sphi 0, %s158
      %s176 = sphi 0, %s176
      %s178 = sphi 0, %s176
      %s179 = sphi 0, %s178
      %s193 = sphi 0, %s179
      %s197 = sphi 0, %s197
      %s199 = sphi 0, %s197
      %s200 = sphi 0, %s199
      %s214 = sphi 0, %s200
      %s218 = sphi 0, %s218
      %s220 = sphi 0, %s218
      %s221 = sphi 0, %s220
      %s235 = sphi 0, %s221
      %s239 = sphi 0, %s239
      %s241 = sphi 0, %s239
      %s242 = sphi 0, %s241
      %s256 = sphi 0, %s242
      %s260 = sphi 0, %s260
      %s262 = sphi 0, %s260
      %s263 = sphi 0, %s262
      %s277 = sphi 0, %s263
      %s281 = sphi 0, %s281
      %s283 = sphi 0, %s281
      %s284 = sphi 0, %s283
      %s298 = sphi 0, %s284
      %s302 = sphi 0, %s302
      %s304 = sphi 0, %s302
      %s305 = sphi 0, %s304
      %s319 = sphi 0, %s305
      %s323 = sphi 0, %s323
      %s325 = sphi 0, %s323
      %s326 = sphi 0, %s325
      %s340 = sphi 0, %s326
      %s344 = sphi 0, %s344
      %s346 = sphi 0, %s344
      %s347 = sphi 0, %s346
      %s361 = sphi 0, %s347
      %s367 = sphi 0, %s369
      %s370 = sphi 0, %s367
      %s371 = sphi 0, %s370
      %s387 = sphi 0, %s371
      %s393 = sphi 0, %s395
      %s396 = sphi 0, %s393
      %s397 = sphi 0, %s396
      %s413 = sphi 0, %s397
    $region4: #{_cvae_forward_impl.1} parent=1 // loop_header_branch
      %30 = sbr.rel (%p28) target = $region8
    $region5: #{_cvae_forward_impl.1} parent=1 // loop_body
      %s32 = ssub.s32 %s27, 1
      %s33 = ssub.s32 %s27, 2
      %s34 = sadd.s32 %s27, 1
      %s35 = ssub.s32 %s27, %s34
      %p36 = scmp.eq.s32.totalorder %s35, 0
      %s38 = sadd.s32 %s37, 1
      %s39 = scalar_select %p36, %s37, %s38
      %p42 = pneg %p36
      %p43 = scmp.eq.s32.totalorder %s27, 1
      %p44 = por %p42, %p43
      %p45 = scmp.ne.s32.totalorder %s37, %s40
      %p46 = scmp.eq.s32.totalorder %s27, 0
      %p47 = por %p45, %p46
      %p48 = scmp.ne.s32.totalorder %s37, %s40
      %p49 = scmp.eq.s32.totalorder %s32, 1
      %p50 = por %p48, %p49
      %p51 = scmp.ne.s32.totalorder %s40, %s41
      %p52 = scmp.eq.s32.totalorder %s32, 0
      %p53 = por %p51, %p52
      %p54 = scmp.ne.s32.totalorder %s40, %s41
      %p55 = scmp.eq.s32.totalorder %s33, 1
      %p56 = por %p54, %p55
      %p58 = scmp.ne.s32.totalorder %s41, %s57
      %p59 = scmp.eq.s32.totalorder %s33, 0
      %p60 = por %p58, %p59
      %s61 = ssub.s32 %s27, %s34
      %p62 = scmp.eq.s32.totalorder %s61, 0
      %s64 = sadd.s32 %s63, 1
      %s65 = scalar_select %p62, %s63, %s64
      %p68 = pneg %p62
      %p69 = scmp.eq.s32.totalorder %s27, 1
      %p70 = por %p68, %p69
      %p71 = scmp.ne.s32.totalorder %s63, %s66
      %p72 = scmp.eq.s32.totalorder %s27, 0
      %p73 = por %p71, %p72
      %p74 = scmp.ne.s32.totalorder %s63, %s66
      %p75 = scmp.eq.s32.totalorder %s32, 1
      %p76 = por %p74, %p75
      %p77 = scmp.ne.s32.totalorder %s66, %s67
      %p78 = scmp.eq.s32.totalorder %s32, 0
      %p79 = por %p77, %p78
      %p80 = scmp.ne.s32.totalorder %s66, %s67
      %p81 = scmp.eq.s32.totalorder %s33, 1
      %p82 = por %p80, %p81
      %p84 = scmp.ne.s32.totalorder %s67, %s83
      %p85 = scmp.eq.s32.totalorder %s33, 0
      %p86 = por %p84, %p85
      %s87 = ssub.s32 %s27, %s34
      %p88 = scmp.eq.s32.totalorder %s87, 0
      %s90 = sadd.s32 %s89, 1
      %s91 = scalar_select %p88, %s89, %s90
      %p94 = pneg %p88
      %p95 = scmp.eq.s32.totalorder %s27, 1
      %p96 = por %p94, %p95
      %p97 = scmp.ne.s32.totalorder %s89, %s92
      %p98 = scmp.eq.s32.totalorder %s27, 0
      %p99 = por %p97, %p98
      %p100 = scmp.ne.s32.totalorder %s89, %s92
      %p101 = scmp.eq.s32.totalorder %s32, 1
      %p102 = por %p100, %p101
      %p103 = scmp.ne.s32.totalorder %s92, %s93
      %p104 = scmp.eq.s32.totalorder %s32, 0
      %p105 = por %p103, %p104
      %p106 = scmp.ne.s32.totalorder %s92, %s93
      %p107 = scmp.eq.s32.totalorder %s33, 1
      %p108 = por %p106, %p107
      %p110 = scmp.ne.s32.totalorder %s93, %s109
      %p111 = scmp.eq.s32.totalorder %s33, 0
      %p112 = por %p110, %p111
      %s114 = sadd.s32 %s113, 1
      %p117 = scmp.eq.s32.totalorder %s27, 1
      %p118 = scmp.ne.s32.totalorder %s113, %s115
      %p119 = scmp.eq.s32.totalorder %s27, 0
      %p120 = por %p118, %p119
      %p121 = scmp.ne.s32.totalorder %s113, %s115
      %p122 = scmp.eq.s32.totalorder %s32, 1
      %p123 = por %p121, %p122
      %p124 = scmp.ne.s32.totalorder %s115, %s116
      %p125 = scmp.eq.s32.totalorder %s32, 0
      %p126 = por %p124, %p125
      %p127 = scmp.ne.s32.totalorder %s115, %s116
      %p128 = scmp.eq.s32.totalorder %s33, 1
      %p129 = por %p127, %p128
      %p131 = scmp.ne.s32.totalorder %s116, %s130
      %p132 = scmp.eq.s32.totalorder %s33, 0
      %p133 = por %p131, %p132
      %s135 = sadd.s32 %s134, 1
      %p138 = scmp.eq.s32.totalorder %s27, 1
      %p139 = scmp.ne.s32.totalorder %s134, %s136
      %p140 = scmp.eq.s32.totalorder %s27, 0
      %p141 = por %p139, %p140
      %p142 = scmp.ne.s32.totalorder %s134, %s136
      %p143 = scmp.eq.s32.totalorder %s32, 1
      %p144 = por %p142, %p143
      %p145 = scmp.ne.s32.totalorder %s136, %s137
      %p146 = scmp.eq.s32.totalorder %s32, 0
      %p147 = por %p145, %p146
      %p148 = scmp.ne.s32.totalorder %s136, %s137
      %p149 = scmp.eq.s32.totalorder %s33, 1
      %p150 = por %p148, %p149
      %p152 = scmp.ne.s32.totalorder %s137, %s151
      %p153 = scmp.eq.s32.totalorder %s33, 0
      %p154 = por %p152, %p153
      %s156 = sadd.s32 %s155, 1
      %p159 = scmp.eq.s32.totalorder %s27, 1
      %p160 = scmp.ne.s32.totalorder %s155, %s157
      %p161 = scmp.eq.s32.totalorder %s27, 0
      %p162 = por %p160, %p161
      %p163 = scmp.ne.s32.totalorder %s155, %s157
      %p164 = scmp.eq.s32.totalorder %s32, 1
      %p165 = por %p163, %p164
      %p166 = scmp.ne.s32.totalorder %s157, %s158
      %p167 = scmp.eq.s32.totalorder %s32, 0
      %p168 = por %p166, %p167
      %p169 = scmp.ne.s32.totalorder %s157, %s158
      %p170 = scmp.eq.s32.totalorder %s33, 1
      %p171 = por %p169, %p170
      %p173 = scmp.ne.s32.totalorder %s158, %s172
      %p174 = scmp.eq.s32.totalorder %s33, 0
      %p175 = por %p173, %p174
      %s177 = sadd.s32 %s176, 1
      %p180 = scmp.eq.s32.totalorder %s27, 1
      %p181 = scmp.ne.s32.totalorder %s176, %s178
      %p182 = scmp.eq.s32.totalorder %s27, 0
      %p183 = por %p181, %p182
      %p184 = scmp.ne.s32.totalorder %s176, %s178
      %p185 = scmp.eq.s32.totalorder %s32, 1
      %p186 = por %p184, %p185
      %p187 = scmp.ne.s32.totalorder %s178, %s179
      %p188 = scmp.eq.s32.totalorder %s32, 0
      %p189 = por %p187, %p188
      %p190 = scmp.ne.s32.totalorder %s178, %s179
      %p191 = scmp.eq.s32.totalorder %s33, 1
      %p192 = por %p190, %p191
      %p194 = scmp.ne.s32.totalorder %s179, %s193
      %p195 = scmp.eq.s32.totalorder %s33, 0
      %p196 = por %p194, %p195
      %s198 = sadd.s32 %s197, 1
      %p201 = scmp.eq.s32.totalorder %s27, 1
      %p202 = scmp.ne.s32.totalorder %s197, %s199
      %p203 = scmp.eq.s32.totalorder %s27, 0
      %p204 = por %p202, %p203
      %p205 = scmp.ne.s32.totalorder %s197, %s199
      %p206 = scmp.eq.s32.totalorder %s32, 1
      %p207 = por %p205, %p206
      %p208 = scmp.ne.s32.totalorder %s199, %s200
      %p209 = scmp.eq.s32.totalorder %s32, 0
      %p210 = por %p208, %p209
      %p211 = scmp.ne.s32.totalorder %s199, %s200
      %p212 = scmp.eq.s32.totalorder %s33, 1
      %p213 = por %p211, %p212
      %p215 = scmp.ne.s32.totalorder %s200, %s214
      %p216 = scmp.eq.s32.totalorder %s33, 0
      %p217 = por %p215, %p216
      %s219 = sadd.s32 %s218, 1
      %p222 = scmp.eq.s32.totalorder %s27, 1
      %p223 = scmp.ne.s32.totalorder %s218, %s220
      %p224 = scmp.eq.s32.totalorder %s27, 0
      %p225 = por %p223, %p224
      %p226 = scmp.ne.s32.totalorder %s218, %s220
      %p227 = scmp.eq.s32.totalorder %s32, 1
      %p228 = por %p226, %p227
      %p229 = scmp.ne.s32.totalorder %s220, %s221
      %p230 = scmp.eq.s32.totalorder %s32, 0
      %p231 = por %p229, %p230
      %p232 = scmp.ne.s32.totalorder %s220, %s221
      %p233 = scmp.eq.s32.totalorder %s33, 1
      %p234 = por %p232, %p233
      %p236 = scmp.ne.s32.totalorder %s221, %s235
      %p237 = scmp.eq.s32.totalorder %s33, 0
      %p238 = por %p236, %p237
      %s240 = sadd.s32 %s239, 1
      %p243 = scmp.eq.s32.totalorder %s27, 1
      %p244 = scmp.ne.s32.totalorder %s239, %s241
      %p245 = scmp.eq.s32.totalorder %s27, 0
      %p246 = por %p244, %p245
      %p247 = scmp.ne.s32.totalorder %s239, %s241
      %p248 = scmp.eq.s32.totalorder %s32, 1
      %p249 = por %p247, %p248
      %p250 = scmp.ne.s32.totalorder %s241, %s242
      %p251 = scmp.eq.s32.totalorder %s32, 0
      %p252 = por %p250, %p251
      %p253 = scmp.ne.s32.totalorder %s241, %s242
      %p254 = scmp.eq.s32.totalorder %s33, 1
      %p255 = por %p253, %p254
      %p257 = scmp.ne.s32.totalorder %s242, %s256
      %p258 = scmp.eq.s32.totalorder %s33, 0
      %p259 = por %p257, %p258
      %s261 = sadd.s32 %s260, 1
      %p264 = scmp.eq.s32.totalorder %s27, 1
      %p265 = scmp.ne.s32.totalorder %s260, %s262
      %p266 = scmp.eq.s32.totalorder %s27, 0
      %p267 = por %p265, %p266
      %p268 = scmp.ne.s32.totalorder %s260, %s262
      %p269 = scmp.eq.s32.totalorder %s32, 1
      %p270 = por %p268, %p269
      %p271 = scmp.ne.s32.totalorder %s262, %s263
      %p272 = scmp.eq.s32.totalorder %s32, 0
      %p273 = por %p271, %p272
      %p274 = scmp.ne.s32.totalorder %s262, %s263
      %p275 = scmp.eq.s32.totalorder %s33, 1
      %p276 = por %p274, %p275
      %p278 = scmp.ne.s32.totalorder %s263, %s277
      %p279 = scmp.eq.s32.totalorder %s33, 0
      %p280 = por %p278, %p279
      %s282 = sadd.s32 %s281, 1
      %p285 = scmp.eq.s32.totalorder %s27, 1
      %p286 = scmp.ne.s32.totalorder %s281, %s283
      %p287 = scmp.eq.s32.totalorder %s27, 0
      %p288 = por %p286, %p287
      %p289 = scmp.ne.s32.totalorder %s281, %s283
      %p290 = scmp.eq.s32.totalorder %s32, 1
      %p291 = por %p289, %p290
      %p292 = scmp.ne.s32.totalorder %s283, %s284
      %p293 = scmp.eq.s32.totalorder %s32, 0
      %p294 = por %p292, %p293
      %p295 = scmp.ne.s32.totalorder %s283, %s284
      %p296 = scmp.eq.s32.totalorder %s33, 1
      %p297 = por %p295, %p296
      %p299 = scmp.ne.s32.totalorder %s284, %s298
      %p300 = scmp.eq.s32.totalorder %s33, 0
      %p301 = por %p299, %p300
      %s303 = sadd.s32 %s302, 1
      %p306 = scmp.eq.s32.totalorder %s27, 1
      %p307 = scmp.ne.s32.totalorder %s302, %s304
      %p308 = scmp.eq.s32.totalorder %s27, 0
      %p309 = por %p307, %p308
      %p310 = scmp.ne.s32.totalorder %s302, %s304
      %p311 = scmp.eq.s32.totalorder %s32, 1
      %p312 = por %p310, %p311
      %p313 = scmp.ne.s32.totalorder %s304, %s305
      %p314 = scmp.eq.s32.totalorder %s32, 0
      %p315 = por %p313, %p314
      %p316 = scmp.ne.s32.totalorder %s304, %s305
      %p317 = scmp.eq.s32.totalorder %s33, 1
      %p318 = por %p316, %p317
      %p320 = scmp.ne.s32.totalorder %s305, %s319
      %p321 = scmp.eq.s32.totalorder %s33, 0
      %p322 = por %p320, %p321
      %s324 = sadd.s32 %s323, 1
      %p327 = scmp.eq.s32.totalorder %s27, 1
      %p328 = scmp.ne.s32.totalorder %s323, %s325
      %p329 = scmp.eq.s32.totalorder %s27, 0
      %p330 = por %p328, %p329
      %p331 = scmp.ne.s32.totalorder %s323, %s325
      %p332 = scmp.eq.s32.totalorder %s32, 1
      %p333 = por %p331, %p332
      %p334 = scmp.ne.s32.totalorder %s325, %s326
      %p335 = scmp.eq.s32.totalorder %s32, 0
      %p336 = por %p334, %p335
      %p337 = scmp.ne.s32.totalorder %s325, %s326
      %p338 = scmp.eq.s32.totalorder %s33, 1
      %p339 = por %p337, %p338
      %p341 = scmp.ne.s32.totalorder %s326, %s340
      %p342 = scmp.eq.s32.totalorder %s33, 0
      %p343 = por %p341, %p342
      %s345 = sadd.s32 %s344, 1
      %p348 = scmp.eq.s32.totalorder %s27, 1
      %p349 = scmp.ne.s32.totalorder %s344, %s346
      %p350 = scmp.eq.s32.totalorder %s27, 0
      %p351 = por %p349, %p350
      %p352 = scmp.ne.s32.totalorder %s344, %s346
      %p353 = scmp.eq.s32.totalorder %s32, 1
      %p354 = por %p352, %p353
      %p355 = scmp.ne.s32.totalorder %s346, %s347
      %p356 = scmp.eq.s32.totalorder %s32, 0
      %p357 = por %p355, %p356
      %p358 = scmp.ne.s32.totalorder %s346, %s347
      %p359 = scmp.eq.s32.totalorder %s33, 1
      %p360 = por %p358, %p359
      %p362 = scmp.ne.s32.totalorder %s347, %s361
      %p363 = scmp.eq.s32.totalorder %s33, 0
      %p364 = por %p362, %p363
      %s365 = ssub.s32 %s27, %s34
      %p366 = scmp.eq.s32.totalorder %s365, 0
      %s368 = sadd.s32 %s367, 1
      %s369 = scalar_select %p366, %s367, %s368
      %p372 = pneg %p366
      %p373 = scmp.eq.s32.totalorder %s27, 1
      %p374 = por %p372, %p373
      %p375 = scmp.ne.s32.totalorder %s367, %s370
      %p376 = scmp.eq.s32.totalorder %s27, 0
      %p377 = por %p375, %p376
      %p378 = scmp.ne.s32.totalorder %s367, %s370
      %p379 = scmp.eq.s32.totalorder %s32, 1
      %p380 = por %p378, %p379
      %p381 = scmp.ne.s32.totalorder %s370, %s371
      %p382 = scmp.eq.s32.totalorder %s32, 0
      %p383 = por %p381, %p382
      %p384 = scmp.ne.s32.totalorder %s370, %s371
      %p385 = scmp.eq.s32.totalorder %s33, 1
      %p386 = por %p384, %p385
      %p388 = scmp.ne.s32.totalorder %s371, %s387
      %p389 = scmp.eq.s32.totalorder %s33, 0
      %p390 = por %p388, %p389
      %s391 = ssub.s32 %s27, %s34
      %p392 = scmp.eq.s32.totalorder %s391, 0
      %s394 = sadd.s32 %s393, 1
      %s395 = scalar_select %p392, %s393, %s394
      %p398 = pneg %p392
      %p399 = scmp.eq.s32.totalorder %s27, 1
      %p400 = por %p398, %p399
      %p401 = scmp.ne.s32.totalorder %s393, %s396
      %p402 = scmp.eq.s32.totalorder %s27, 0
      %p403 = por %p401, %p402
      %p404 = scmp.ne.s32.totalorder %s393, %s396
      %p405 = scmp.eq.s32.totalorder %s32, 1
      %p406 = por %p404, %p405
      %p407 = scmp.ne.s32.totalorder %s396, %s397
      %p408 = scmp.eq.s32.totalorder %s32, 0
      %p409 = por %p407, %p408
      %p410 = scmp.ne.s32.totalorder %s396, %s397
      %p411 = scmp.eq.s32.totalorder %s33, 1
      %p412 = por %p410, %p411
      %p414 = scmp.ne.s32.totalorder %s397, %s413
      %p415 = scmp.eq.s32.totalorder %s33, 0
      %p416 = por %p414, %p415
      %p417 = scmp.le.s32.totalorder 1, %s27
      %p418 = scmp.lt.s32.totalorder %s27, 3
      %p419 = pnand %p417, %p418
      %p420 = pneg %p419
      // Predicated region
      $region9: #{_cvae_forward_impl.1} parent=5 // pred_check
        _
      $region10: #{_cvae_forward_impl.1} parent=5 // pred_check_branch
        %422 = sbr.rel (%p419) target = $region12
      $region11: #{_cvae_forward_impl.1} parent=5 // pred_region
        %s423 = ssub.s32 %s27, 1
        // Predicated region
        $region13: #{_cvae_forward_impl.1} parent=11 // pred_check
          %p424 = pneg %p126
        $region14: #{_cvae_forward_impl.1} parent=11 // pred_check_branch
          %426 = sbr.rel (%p424) target = $region16
        $region15: #{_cvae_forward_impl.1} parent=11 // pred_region
          %s428 = ssub.s32 1024, 1024
          %429 = vsyncadd [#allocation3], %s428
          %s430 = sshll.u32 [#allocation2], 4
          %s431 = int_to_ptr.vmem [resolvable:$true] %s430
          %436 = dma.hbm_to_vmem [thread:$0]  %s3, 1024, %s431, [#allocation3], 64, 64, 4
        $region16: #{_cvae_forward_impl.1} parent=11 // pred_fallthru
          _
        // Predicated region
        $region17: #{_cvae_forward_impl.1} parent=11 // pred_check
          %p437 = pneg %p147
        $region18: #{_cvae_forward_impl.1} parent=11 // pred_check_branch
          %439 = sbr.rel (%p437) target = $region20
        $region19: #{_cvae_forward_impl.1} parent=11 // pred_region
          %s441 = ssub.s32 1024, 1024
          %442 = vsyncadd [#allocation5], %s441
          %s443 = sshll.u32 [#allocation4], 4
          %s444 = int_to_ptr.vmem [resolvable:$true] %s443
          %449 = dma.hbm_to_vmem [thread:$0]  %s4, 1024, %s444, [#allocation5], 64, 64, 4
        $region20: #{_cvae_forward_impl.1} parent=11 // pred_fallthru
          _
        // Predicated region
        $region21: #{_cvae_forward_impl.1} parent=11 // pred_check
          %p450 = pneg %p168
        $region22: #{_cvae_forward_impl.1} parent=11 // pred_check_branch
          %452 = sbr.rel (%p450) target = $region24
        $region23: #{_cvae_forward_impl.1} parent=11 // pred_region
          _
        $region24: #{_cvae_forward_impl.1} parent=11 // pred_fallthru
          _
        // Predicated region
        $region25: #{_cvae_forward_impl.1} parent=11 // pred_check
          %p453 = pneg %p189
        $region26: #{_cvae_forward_impl.1} parent=11 // pred_check_branch
          %455 = sbr.rel (%p453) target = $region28
        $region27: #{_cvae_forward_impl.1} parent=11 // pred_region
          _
        $region28: #{_cvae_forward_impl.1} parent=11 // pred_fallthru
          _
        // Predicated region
        $region29: #{_cvae_forward_impl.1} parent=11 // pred_check
          %p456 = pneg %p210
        $region30: #{_cvae_forward_impl.1} parent=11 // pred_check_branch
          %458 = sbr.rel (%p456) target = $region32
        $region31: #{_cvae_forward_impl.1} parent=11 // pred_region
          %s460 = ssub.s32 1024, 1024
          %461 = vsyncadd [#allocation5], %s460
          %s462 = sshll.u32 [#allocation6], 4
          %s463 = int_to_ptr.vmem [resolvable:$true] %s462
          %468 = dma.hbm_to_vmem [thread:$0]  %s7, 1024, %s463, [#allocation5], 64, 64, 4
        $region32: #{_cvae_forward_impl.1} parent=11 // pred_fallthru
          _
        // Predicated region
        $region33: #{_cvae_forward_impl.1} parent=11 // pred_check
          %p469 = pneg %p231
        $region34: #{_cvae_forward_impl.1} parent=11 // pred_check_branch
          %471 = sbr.rel (%p469) target = $region36
        $region35: #{_cvae_forward_impl.1} parent=11 // pred_region
          %s473 = ssub.s32 1024, 1024
          %474 = vsyncadd [#allocation8], %s473
          %s475 = sshll.u32 [#allocation7], 4
          %s476 = int_to_ptr.vmem [resolvable:$true] %s475
          %481 = dma.hbm_to_vmem [thread:$0]  %s8, 1024, %s476, [#allocation8], 64, 64, 4
        $region36: #{_cvae_forward_impl.1} parent=11 // pred_fallthru
          _
        // Predicated region
        $region37: #{_cvae_forward_impl.1} parent=11 // pred_check
          %p482 = pneg %p252
        $region38: #{_cvae_forward_impl.1} parent=11 // pred_check_branch
          %484 = sbr.rel (%p482) target = $region40
        $region39: #{_cvae_forward_impl.1} parent=11 // pred_region
          _
        $region40: #{_cvae_forward_impl.1} parent=11 // pred_fallthru
          _
        // Predicated region
        $region41: #{_cvae_forward_impl.1} parent=11 // pred_check
          %p485 = pneg %p273
        $region42: #{_cvae_forward_impl.1} parent=11 // pred_check_branch
          %487 = sbr.rel (%p485) target = $region44
        $region43: #{_cvae_forward_impl.1} parent=11 // pred_region
          _
        $region44: #{_cvae_forward_impl.1} parent=11 // pred_fallthru
          _
        // Predicated region
        $region45: #{_cvae_forward_impl.1} parent=11 // pred_check
          %p488 = pneg %p294
        $region46: #{_cvae_forward_impl.1} parent=11 // pred_check_branch
          %490 = sbr.rel (%p488) target = $region48
        $region47: #{_cvae_forward_impl.1} parent=11 // pred_region
          _
        $region48: #{_cvae_forward_impl.1} parent=11 // pred_fallthru
          _
        // Predicated region
        $region49: #{_cvae_forward_impl.1} parent=11 // pred_check
          %p491 = pneg %p315
        $region50: #{_cvae_forward_impl.1} parent=11 // pred_check_branch
          %493 = sbr.rel (%p491) target = $region52
        $region51: #{_cvae_forward_impl.1} parent=11 // pred_region
          %s495 = ssub.s32 16, 16
          %496 = vsyncadd [#allocation8], %s495
          %s498 = sshll.u32 [#allocation9], 4
          %s499 = int_to_ptr.vmem [resolvable:$true] %s498
          %501 = dma.hbm_to_vmem [thread:$0]  %s12, 16, %s499, [#allocation8]
        $region52: #{_cvae_forward_impl.1} parent=11 // pred_fallthru
          _
        // Predicated region
        $region53: #{_cvae_forward_impl.1} parent=11 // pred_check
          %p502 = pneg %p336
        $region54: #{_cvae_forward_impl.1} parent=11 // pred_check_branch
          %504 = sbr.rel (%p502) target = $region56
        $region55: #{_cvae_forward_impl.1} parent=11 // pred_region
          %s506 = ssub.s32 16, 16
          %507 = vsyncadd [#allocation11], %s506
          %s509 = sshll.u32 [#allocation10], 4
          %s510 = int_to_ptr.vmem [resolvable:$true] %s509
          %512 = dma.hbm_to_vmem [thread:$0]  %s13, 16, %s510, [#allocation11]
        $region56: #{_cvae_forward_impl.1} parent=11 // pred_fallthru
          _
        // Predicated region
        $region57: #{_cvae_forward_impl.1} parent=11 // pred_check
          %p513 = pneg %p357
        $region58: #{_cvae_forward_impl.1} parent=11 // pred_check_branch
          %515 = sbr.rel (%p513) target = $region60
        $region59: #{_cvae_forward_impl.1} parent=11 // pred_region
          _
        $region60: #{_cvae_forward_impl.1} parent=11 // pred_fallthru
          _
      $region12: #{_cvae_forward_impl.1} parent=5 // pred_fallthru
        _
      %p516 = scmp.lt.s32.totalorder %s27, 2
      // Predicated region
      $region61: #{_cvae_forward_impl.1} parent=5 // pred_check
        %p517 = pneg %p516
      $region62: #{_cvae_forward_impl.1} parent=5 // pred_check_branch
        %519 = sbr.rel (%p517) target = $region64
      $region63: #{_cvae_forward_impl.1} parent=5 // pred_region
        // Predicated region
        $region65: #{_cvae_forward_impl.1} parent=63 // pred_check
          %p520 = pneg %p47
        $region66: #{_cvae_forward_impl.1} parent=63 // pred_check_branch
          %522 = sbr.rel (%p520) target = $region68
        $region67: #{_cvae_forward_impl.1} parent=63 // pred_region
          %s523 = smul.u32 2, %s27
          %p524 = scmp.lt.s32.totalorder %s523, 3
          %s525 = scalar_select %p524, %s523, 3
          %s526 = smul.addr %s525, 4
          %s527 = scalar_lea.vmem %s0, %s526
          %s528 = smul.u32 2, %s27
        $region68: #{_cvae_forward_impl.1} parent=63 // pred_fallthru
          _
        // Predicated region
        $region69: #{_cvae_forward_impl.1} parent=63 // pred_check
          %p529 = pneg %p73
        $region70: #{_cvae_forward_impl.1} parent=63 // pred_check_branch
          %531 = sbr.rel (%p529) target = $region72
        $region71: #{_cvae_forward_impl.1} parent=63 // pred_region
          %s532 = smul.u32 2, %s27
          %p533 = scmp.lt.s32.totalorder %s532, 3
          %s534 = scalar_select %p533, %s532, 3
          %s535 = smul.addr %s534, 4
          %s536 = scalar_lea.vmem %s1, %s535
          %s537 = smul.u32 2, %s27
        $region72: #{_cvae_forward_impl.1} parent=63 // pred_fallthru
          _
        // Predicated region
        $region73: #{_cvae_forward_impl.1} parent=63 // pred_check
          %p538 = pneg %p99
        $region74: #{_cvae_forward_impl.1} parent=63 // pred_check_branch
          %540 = sbr.rel (%p538) target = $region76
        $region75: #{_cvae_forward_impl.1} parent=63 // pred_region
          %s541 = smul.u32 2, %s27
          %p542 = scmp.lt.s32.totalorder %s541, 3
          %s543 = scalar_select %p542, %s541, 3
          %s544 = smul.addr %s543, 8
          %s545 = scalar_lea.vmem %s2, %s544
          %s546 = smul.u32 2, %s27
        $region76: #{_cvae_forward_impl.1} parent=63 // pred_fallthru
          _
      $region64: #{_cvae_forward_impl.1} parent=5 // pred_fallthru
        _
      %p547 = scmp.le.s32.totalorder 1, %s27
      %p548 = scmp.lt.s32.totalorder %s27, 3
      %p549 = pnand %p547, %p548
      %p550 = pneg %p549
      // Predicated region
      $region77: #{_cvae_forward_impl.1} parent=5 // pred_check
        _
      $region78: #{_cvae_forward_impl.1} parent=5 // pred_check_branch
        %552 = sbr.rel (%p549) target = $region80
      $region79: #{_cvae_forward_impl.1} parent=5 // pred_region
        %s553 = ssub.s32 %s27, 1
        // Predicated region
        $region81: #{_cvae_forward_impl.1} parent=79 // pred_check
          %p554 = pneg %p126
        $region82: #{_cvae_forward_impl.1} parent=79 // pred_check_branch
          %556 = sbr.rel (%p554) target = $region84
        $region83: #{_cvae_forward_impl.1} parent=79 // pred_region
          %557 = dma.done [#allocation3], 1024
        $region84: #{_cvae_forward_impl.1} parent=79 // pred_fallthru
          _
        // Predicated region
        $region85: #{_cvae_forward_impl.1} parent=79 // pred_check
          %p558 = pneg %p147
        $region86: #{_cvae_forward_impl.1} parent=79 // pred_check_branch
          %560 = sbr.rel (%p558) target = $region88
        $region87: #{_cvae_forward_impl.1} parent=79 // pred_region
          %561 = dma.done [#allocation5], 1024
        $region88: #{_cvae_forward_impl.1} parent=79 // pred_fallthru
          _
        // Predicated region
        $region89: #{_cvae_forward_impl.1} parent=79 // pred_check
          %p562 = pneg %p210
        $region90: #{_cvae_forward_impl.1} parent=79 // pred_check_branch
          %564 = sbr.rel (%p562) target = $region92
        $region91: #{_cvae_forward_impl.1} parent=79 // pred_region
          %565 = dma.done [#allocation5], 1024
        $region92: #{_cvae_forward_impl.1} parent=79 // pred_fallthru
          _
        // Predicated region
        $region93: #{_cvae_forward_impl.1} parent=79 // pred_check
          %p566 = pneg %p231
        $region94: #{_cvae_forward_impl.1} parent=79 // pred_check_branch
          %568 = sbr.rel (%p566) target = $region96
        $region95: #{_cvae_forward_impl.1} parent=79 // pred_region
          %569 = dma.done [#allocation8], 1024
        $region96: #{_cvae_forward_impl.1} parent=79 // pred_fallthru
          _
        // Predicated region
        $region97: #{_cvae_forward_impl.1} parent=79 // pred_check
          %p570 = pneg %p315
        $region98: #{_cvae_forward_impl.1} parent=79 // pred_check_branch
          %572 = sbr.rel (%p570) target = $region100
        $region99: #{_cvae_forward_impl.1} parent=79 // pred_region
          %573 = dma.done [#allocation8], 16
        $region100: #{_cvae_forward_impl.1} parent=79 // pred_fallthru
          _
        // Predicated region
        $region101: #{_cvae_forward_impl.1} parent=79 // pred_check
          %p574 = pneg %p336
        $region102: #{_cvae_forward_impl.1} parent=79 // pred_check_branch
          %576 = sbr.rel (%p574) target = $region104
        $region103: #{_cvae_forward_impl.1} parent=79 // pred_region
          %577 = dma.done [#allocation11], 16
        $region104: #{_cvae_forward_impl.1} parent=79 // pred_fallthru
          _
        %s578 = smul.u32 2, %s32
        %p579 = scmp.lt.s32.totalorder %s578, 3
        %s580 = scalar_select %p579, %s578, 3
        %s581 = smul.addr %s580, 4
        %s582 = scalar_lea.vmem %s0, %s581
        %p583 = pneg %p53
        %p584 = pneg %p50
        %s585 = smul.u32 2, %s32
        %p586 = scmp.lt.s32.totalorder %s585, 3
        %s587 = scalar_select %p586, %s585, 3
        %s588 = smul.addr %s587, 4
        %s589 = scalar_lea.vmem %s1, %s588
        %p590 = pneg %p79
        %p591 = pneg %p76
        %s592 = smul.u32 2, %s32
        %p593 = scmp.lt.s32.totalorder %s592, 3
        %s594 = scalar_select %p593, %s592, 3
        %s595 = smul.addr %s594, 8
        %s596 = scalar_lea.vmem %s2, %s595
        %p597 = pneg %p105
        %p598 = pneg %p102
        %p599 = pneg %p126
        %p600 = pneg %p123
        %p601 = pneg %p147
        %p602 = pneg %p144
        %p603 = pneg %p168
        %p604 = pneg %p165
        %p605 = pneg %p189
        %p606 = pneg %p186
        %p607 = pneg %p210
        %p608 = pneg %p207
        %p609 = pneg %p231
        %p610 = pneg %p228
        %p611 = pneg %p252
        %p612 = pneg %p249
        %p613 = pneg %p273
        %p614 = pneg %p270
        %p615 = pneg %p294
        %p616 = pneg %p291
        %p617 = pneg %p315
        %p618 = pneg %p312
        %p619 = pneg %p336
        %p620 = pneg %p333
        %p621 = pneg %p357
        %p622 = pneg %p354
        %p623 = pneg %p383
        %p624 = pneg %p380
        %s625 = smul.u32 2, %s32
        %p626 = scmp.lt.s32.totalorder %s625, 3
        %s627 = scalar_select %p626, %s625, 3
        %s628 = smul.addr %s627, 8
        %s629 = scalar_lea.vmem %s15, %s628
        %p630 = pneg %p409
        %p631 = pneg %p406
        %s632 = smul.u32 2, %s32
        %p633 = scmp.lt.s32.totalorder %s632, 3
        %s634 = scalar_select %p633, %s632, 3
        %s635 = smul.addr %s634, 2
        %s636 = smul.addr %s635, 8
        %s637 = scalar_lea.vmem %s16, %s636
        %s638 = smul.u32 2, %s32
        %p639 = scmp.lt.s32.totalorder %s638, 3
        %s640 = scalar_select %p639, %s638, 3
        %s641 = smul.addr %s640, 4
        %s642 = scalar_lea.vmem %s0, %s641
        %s643 = smul.u32 2, %s32
        %s644 = smul.u32 2, %s32
        %p645 = scmp.lt.s32.totalorder %s644, 3
        %s646 = scalar_select %p645, %s644, 3
        %s647 = smul.addr %s646, 4
        %s648 = scalar_lea.vmem %s1, %s647
        %s649 = smul.u32 2, %s32
        %s650 = smul.u32 2, %s32
        %p651 = scmp.lt.s32.totalorder %s650, 3
        %s652 = scalar_select %p651, %s650, 3
        %s653 = smul.addr %s652, 8
        %s654 = scalar_lea.vmem %s2, %s653
        %s655 = smul.u32 2, %s32
        %s656 = smul.u32 2, %s32
        %p657 = scmp.lt.s32.totalorder %s656, 3
        %s658 = scalar_select %p657, %s656, 3
        %s659 = smul.addr %s658, 8
        %s660 = scalar_lea.vmem %s15, %s659
        %s661 = smul.u32 2, %s32
        %s662 = smul.u32 2, %s32
        %p663 = scmp.lt.s32.totalorder %s662, 3
        %s664 = scalar_select %p663, %s662, 3
        %s665 = smul.addr %s664, 2
        %s666 = smul.addr %s665, 8
        %s667 = scalar_lea.vmem %s16, %s666
        %s668 = smul.u32 2, %s32
        %v670 = vld [vmem:[%s642] sm:$0xf]
        %v671 = vld [vmem:[%s642 + $0x4] sm:$0xf]
        %v672 = vld [vmem:[%s648] sm:$0xf]
        %v673 = vld [vmem:[%s648 + $0x4] sm:$0xf]
        %v674 = vld [vmem:[%s654] sm:$0xff]
        %v675 = vld [vmem:[%s654 + $0x8] sm:$0xff]
        %v676 = vld [vmem:[#allocation2] sm:$0xf]
        %v677 = vld [vmem:[#allocation2 + $0x4] sm:$0xf]
        %v678 = vld [vmem:[#allocation2 + $0x8] sm:$0xf]
        %v679 = vld [vmem:[#allocation2 + $0xc] sm:$0xf]
        %v680 = vld [vmem:[#allocation2 + $0x10] sm:$0xf]
        %v681 = vld [vmem:[#allocation2 + $0x14] sm:$0xf]
        %v682 = vld [vmem:[#allocation2 + $0x18] sm:$0xf]
        %v683 = vld [vmem:[#allocation2 + $0x1c] sm:$0xf]
        %v684 = vld [vmem:[#allocation2 + $0x20] sm:$0xf]
        %v685 = vld [vmem:[#allocation2 + $0x24] sm:$0xf]
        %v686 = vld [vmem:[#allocation2 + $0x28] sm:$0xf]
        %v687 = vld [vmem:[#allocation2 + $0x2c] sm:$0xf]
        %v688 = vld [vmem:[#allocation2 + $0x30] sm:$0xf]
        %v689 = vld [vmem:[#allocation2 + $0x34] sm:$0xf]
        %v690 = vld [vmem:[#allocation2 + $0x38] sm:$0xf]
        %v691 = vld [vmem:[#allocation2 + $0x3c] sm:$0xf]
        %v692 = vld [vmem:[%s9] sm:$0x1]
        %v694 = vlaneseq
        %v695 = vshrl.u32 %v694, 7
        %v696 = vsub.s32 0, %v695
        %v697 = vrot.slane %v692, %v696
        %v701 = vunpack.c.l.b16 %v670
        %v702 = vunpack.c.l.b16 %v671
        %v703 = vpack.c.b16 %v702, %v701
        %v721 = vunpack.c.l.b16 %v676
        %v722 = vunpack.c.l.b16 %v677
        %v723 = vunpack.c.l.b16 %v678
        %v724 = vunpack.c.l.b16 %v679
        %v725 = vunpack.c.l.b16 %v680
        %v726 = vunpack.c.l.b16 %v681
        %v727 = vunpack.c.l.b16 %v682
        %v728 = vunpack.c.l.b16 %v683
        %v729 = vunpack.c.l.b16 %v684
        %v730 = vunpack.c.l.b16 %v685
        %v731 = vunpack.c.l.b16 %v686
        %v732 = vunpack.c.l.b16 %v687
        %v733 = vunpack.c.l.b16 %v688
        %v734 = vunpack.c.l.b16 %v689
        %v735 = vunpack.c.l.b16 %v690
        %v736 = vunpack.c.l.b16 %v691
        %v737 = vpack.c.b16 %v722, %v721
        %v738 = vpack.c.b16 %v724, %v723
        %v739 = vpack.c.b16 %v726, %v725
        %v740 = vpack.c.b16 %v728, %v727
        %v741 = vpack.c.b16 %v730, %v729
        %v742 = vpack.c.b16 %v732, %v731
        %v743 = vpack.c.b16 %v734, %v733
        %v744 = vpack.c.b16 %v736, %v735
        %753 = vmatprep.subr.bf16.mxu0 0
        %754 = vmatpush1.bf16.msra.mxu0 %v737
        %755 = vmatprep.subr.bf16.mxu0 0
        %756 = vmatpush1.bf16.msra.mxu0 %v738
        %757 = vmatprep.subr.bf16.mxu0 0
        %758 = vmatpush1.bf16.msra.mxu0 %v739
        %759 = vmatprep.subr.bf16.mxu0 0
        %760 = vmatpush1.bf16.msra.mxu0 %v740
        %761 = vmatprep.subr.bf16.mxu0 0
        %762 = vmatpush1.bf16.msra.mxu0 %v741
        %763 = vmatprep.subr.bf16.mxu0 0
        %764 = vmatpush1.bf16.msra.mxu0 %v742
        %765 = vmatprep.subr.bf16.mxu0 0
        %766 = vmatpush1.bf16.msra.mxu0 %v743
        %767 = vmatprep.subr.bf16.mxu0 0
        %768 = vmatpush1.bf16.msra.mxu0 %v744
        %769 = vmatprep.subr.bf16.mxu0 0
        %770 = vmatpush1.bf16.msra.mxu0 0
        %771 = vmatprep.subr.bf16.mxu0 0
        %772 = vmatpush1.bf16.msra.mxu0 0
        %773 = vmatprep.subr.bf16.mxu0 0
        %774 = vmatpush1.bf16.msra.mxu0 0
        %775 = vmatprep.subr.bf16.mxu0 0
        %776 = vmatpush1.bf16.msra.mxu0 0
        %777 = vmatprep.subr.bf16.mxu0 0
        %778 = vmatpush1.bf16.msra.mxu0 0
        %779 = vmatprep.subr.bf16.mxu0 0
        %780 = vmatpush1.bf16.msra.mxu0 0
        %781 = vmatprep.subr.bf16.mxu0 0
        %782 = vmatpush1.bf16.msra.mxu0 0
        %783 = vmatprep.subr.bf16.mxu0 0
        %784 = vmatpush1.bf16.msra.mxu0 0
        %785 = vmatprep.mubr.bf16.mxu0 0
        %786 = vmatmul.mubr.bf16.gmra.mrb[0].mxu0 %v703
        %v787 = vpop.f32.mrb[0].mxu0
        %v788 = vadd.f32 %v697, %v787
        %v789 = vpop.f32.mrb[0].mxu0
        %v790 = vpop.f32.mrb[0].mxu0
        %v791 = vadd.f32 %v697, %v790
        %v792 = vpop.f32.mrb[0].mxu0
        %793 = vdwg.mxu0
        %v794 = vmax.f32 %v788, 0.0
        %v795 = vmax.f32 %v791, 0.0
        %v796 = vpack.c.bf16 %v795, %v794
        %v797 = vld [vmem:[#allocation4] sm:$0xf]
        %v798 = vld [vmem:[#allocation4 + $0x4] sm:$0xf]
        %v799 = vld [vmem:[#allocation4 + $0x8] sm:$0xf]
        %v800 = vld [vmem:[#allocation4 + $0xc] sm:$0xf]
        %v801 = vld [vmem:[#allocation4 + $0x10] sm:$0xf]
        %v802 = vld [vmem:[#allocation4 + $0x14] sm:$0xf]
        %v803 = vld [vmem:[#allocation4 + $0x18] sm:$0xf]
        %v804 = vld [vmem:[#allocation4 + $0x1c] sm:$0xf]
        %v805 = vld [vmem:[#allocation4 + $0x20] sm:$0xf]
        %v806 = vld [vmem:[#allocation4 + $0x24] sm:$0xf]
        %v807 = vld [vmem:[#allocation4 + $0x28] sm:$0xf]
        %v808 = vld [vmem:[#allocation4 + $0x2c] sm:$0xf]
        %v809 = vld [vmem:[#allocation4 + $0x30] sm:$0xf]
        %v810 = vld [vmem:[#allocation4 + $0x34] sm:$0xf]
        %v811 = vld [vmem:[#allocation4 + $0x38] sm:$0xf]
        %v812 = vld [vmem:[#allocation4 + $0x3c] sm:$0xf]
        %v813 = vld [vmem:[%s10] sm:$0x1]
        %v815 = vlaneseq
        %v816 = vshrl.u32 %v815, 7
        %v817 = vsub.s32 0, %v816
        %v818 = vrot.slane %v813, %v817
        %v836 = vunpack.c.l.b16 %v797
        %v837 = vunpack.c.l.b16 %v798
        %v838 = vunpack.c.l.b16 %v799
        %v839 = vunpack.c.l.b16 %v800
        %v840 = vunpack.c.l.b16 %v801
        %v841 = vunpack.c.l.b16 %v802
        %v842 = vunpack.c.l.b16 %v803
        %v843 = vunpack.c.l.b16 %v804
        %v844 = vunpack.c.l.b16 %v805
        %v845 = vunpack.c.l.b16 %v806
        %v846 = vunpack.c.l.b16 %v807
        %v847 = vunpack.c.l.b16 %v808
        %v848 = vunpack.c.l.b16 %v809
        %v849 = vunpack.c.l.b16 %v810
        %v850 = vunpack.c.l.b16 %v811
        %v851 = vunpack.c.l.b16 %v812
        %v852 = vpack.c.b16 %v837, %v836
        %v853 = vpack.c.b16 %v839, %v838
        %v854 = vpack.c.b16 %v841, %v840
        %v855 = vpack.c.b16 %v843, %v842
        %v856 = vpack.c.b16 %v845, %v844
        %v857 = vpack.c.b16 %v847, %v846
        %v858 = vpack.c.b16 %v849, %v848
        %v859 = vpack.c.b16 %v851, %v850
        %868 = vmatprep.subr.bf16.mxu0 0
        %869 = vmatpush1.bf16.msra.mxu0 %v852
        %870 = vmatprep.subr.bf16.mxu0 0
        %871 = vmatpush1.bf16.msra.mxu0 %v853
        %872 = vmatprep.subr.bf16.mxu0 0
        %873 = vmatpush1.bf16.msra.mxu0 %v854
        %874 = vmatprep.subr.bf16.mxu0 0
        %875 = vmatpush1.bf16.msra.mxu0 %v855
        %876 = vmatprep.subr.bf16.mxu0 0
        %877 = vmatpush1.bf16.msra.mxu0 %v856
        %878 = vmatprep.subr.bf16.mxu0 0
        %879 = vmatpush1.bf16.msra.mxu0 %v857
        %880 = vmatprep.subr.bf16.mxu0 0
        %881 = vmatpush1.bf16.msra.mxu0 %v858
        %882 = vmatprep.subr.bf16.mxu0 0
        %883 = vmatpush1.bf16.msra.mxu0 %v859
        %884 = vmatprep.subr.bf16.mxu0 0
        %885 = vmatpush1.bf16.msra.mxu0 0
        %886 = vmatprep.subr.bf16.mxu0 0
        %887 = vmatpush1.bf16.msra.mxu0 0
        %888 = vmatprep.subr.bf16.mxu0 0
        %889 = vmatpush1.bf16.msra.mxu0 0
        %890 = vmatprep.subr.bf16.mxu0 0
        %891 = vmatpush1.bf16.msra.mxu0 0
        %892 = vmatprep.subr.bf16.mxu0 0
        %893 = vmatpush1.bf16.msra.mxu0 0
        %894 = vmatprep.subr.bf16.mxu0 0
        %895 = vmatpush1.bf16.msra.mxu0 0
        %896 = vmatprep.subr.bf16.mxu0 0
        %897 = vmatpush1.bf16.msra.mxu0 0
        %898 = vmatprep.subr.bf16.mxu0 0
        %899 = vmatpush1.bf16.msra.mxu0 0
        %900 = vmatprep.mubr.bf16.mxu0 0
        %901 = vmatmul.mubr.bf16.gmra.mrb[0].mxu0 %v796
        %v902 = vpop.f32.mrb[0].mxu0
        %v903 = vadd.f32 %v818, %v902
        %v904 = vpop.f32.mrb[0].mxu0
        %v905 = vpop.f32.mrb[0].mxu0
        %v906 = vadd.f32 %v818, %v905
        %v907 = vpop.f32.mrb[0].mxu0
        %908 = vdwg.mxu0
        %v909 = vmax.f32 %v903, 0.0
        %v910 = vmax.f32 %v906, 0.0
        %v911 = vpack.c.bf16 %v910, %v909
        %v912 = vld [vmem:[%s5] sm:$0xff]
        %v913 = vld [vmem:[%s5 + $0x8] sm:$0xff]
        %v914 = vld [vmem:[%s5 + $0x10] sm:$0xff]
        %v915 = vld [vmem:[%s5 + $0x18] sm:$0xff]
        %v916 = vld [vmem:[%s5 + $0x20] sm:$0xff]
        %v917 = vld [vmem:[%s5 + $0x28] sm:$0xff]
        %v918 = vld [vmem:[%s5 + $0x30] sm:$0xff]
        %v919 = vld [vmem:[%s5 + $0x38] sm:$0xff]
        %v920 = vld [vmem:[%s5 + $0x40] sm:$0xff]
        %v921 = vld [vmem:[%s5 + $0x48] sm:$0xff]
        %v922 = vld [vmem:[%s5 + $0x50] sm:$0xff]
        %v923 = vld [vmem:[%s5 + $0x58] sm:$0xff]
        %v924 = vld [vmem:[%s5 + $0x60] sm:$0xff]
        %v925 = vld [vmem:[%s5 + $0x68] sm:$0xff]
        %v926 = vld [vmem:[%s5 + $0x70] sm:$0xff]
        %v927 = vld [vmem:[%s5 + $0x78] sm:$0xff]
        %v928 = vld [vmem:[%s11] sm:$0x3]
        %v930 = vlaneseq
        %v931 = vshrl.u32 %v930, 7
        %v932 = vsub.s32 0, %v931
        %v933 = vrot.slane %v928, %v932
        %v934 = vlaneseq
        %v935 = vshrl.u32 %v934, 7
        %v936 = vsub.s32 1, %v935
        %v937 = vrot.slane %v928, %v936
        %v956 = vunpack.c.l.b16 %v912
        %v957 = vunpack.c.h.b16 %v912
        %v958 = vunpack.c.l.b16 %v913
        %v959 = vunpack.c.h.b16 %v913
        %v960 = vunpack.c.l.b16 %v914
        %v961 = vunpack.c.h.b16 %v914
        %v962 = vunpack.c.l.b16 %v915
        %v963 = vunpack.c.h.b16 %v915
        %v964 = vunpack.c.l.b16 %v916
        %v965 = vunpack.c.h.b16 %v916
        %v966 = vunpack.c.l.b16 %v917
        %v967 = vunpack.c.h.b16 %v917
        %v968 = vunpack.c.l.b16 %v918
        %v969 = vunpack.c.h.b16 %v918
        %v970 = vunpack.c.l.b16 %v919
        %v971 = vunpack.c.h.b16 %v919
        %v972 = vunpack.c.l.b16 %v920
        %v973 = vunpack.c.h.b16 %v920
        %v974 = vunpack.c.l.b16 %v921
        %v975 = vunpack.c.h.b16 %v921
        %v976 = vunpack.c.l.b16 %v922
        %v977 = vunpack.c.h.b16 %v922
        %v978 = vunpack.c.l.b16 %v923
        %v979 = vunpack.c.h.b16 %v923
        %v980 = vunpack.c.l.b16 %v924
        %v981 = vunpack.c.h.b16 %v924
        %v982 = vunpack.c.l.b16 %v925
        %v983 = vunpack.c.h.b16 %v925
        %v984 = vunpack.c.l.b16 %v926
        %v985 = vunpack.c.h.b16 %v926
        %v986 = vunpack.c.l.b16 %v927
        %v987 = vunpack.c.h.b16 %v927
        %v988 = vpack.c.b16 %v958, %v956
        %v989 = vpack.c.b16 %v959, %v957
        %v990 = vpack.c.b16 %v962, %v960
        %v991 = vpack.c.b16 %v963, %v961
        %v992 = vpack.c.b16 %v966, %v964
        %v993 = vpack.c.b16 %v967, %v965
        %v994 = vpack.c.b16 %v970, %v968
        %v995 = vpack.c.b16 %v971, %v969
        %v996 = vpack.c.b16 %v974, %v972
        %v997 = vpack.c.b16 %v975, %v973
        %v998 = vpack.c.b16 %v978, %v976
        %v999 = vpack.c.b16 %v979, %v977
        %v1000 = vpack.c.b16 %v982, %v980
        %v1001 = vpack.c.b16 %v983, %v981
        %v1002 = vpack.c.b16 %v986, %v984
        %v1003 = vpack.c.b16 %v987, %v985
        %1020 = vmatprep.subr.bf16.mxu0 %v989
        %1021 = vmatpush1.bf16.msra.mxu0 %v988
        %1022 = vmatprep.subr.bf16.mxu0 %v991
        %1023 = vmatpush1.bf16.msra.mxu0 %v990
        %1024 = vmatprep.subr.bf16.mxu0 %v993
        %1025 = vmatpush1.bf16.msra.mxu0 %v992
        %1026 = vmatprep.subr.bf16.mxu0 %v995
        %1027 = vmatpush1.bf16.msra.mxu0 %v994
        %1028 = vmatprep.subr.bf16.mxu0 %v997
        %1029 = vmatpush1.bf16.msra.mxu0 %v996
        %1030 = vmatprep.subr.bf16.mxu0 %v999
        %1031 = vmatpush1.bf16.msra.mxu0 %v998
        %1032 = vmatprep.subr.bf16.mxu0 %v1001
        %1033 = vmatpush1.bf16.msra.mxu0 %v1000
        %1034 = vmatprep.subr.bf16.mxu0 %v1003
        %1035 = vmatpush1.bf16.msra.mxu0 %v1002
        %1036 = vmatprep.subr.bf16.mxu0 0
        %1037 = vmatpush1.bf16.msra.mxu0 0
        %1038 = vmatprep.subr.bf16.mxu0 0
        %1039 = vmatpush1.bf16.msra.mxu0 0
        %1040 = vmatprep.subr.bf16.mxu0 0
        %1041 = vmatpush1.bf16.msra.mxu0 0
        %1042 = vmatprep.subr.bf16.mxu0 0
        %1043 = vmatpush1.bf16.msra.mxu0 0
        %1044 = vmatprep.subr.bf16.mxu0 0
        %1045 = vmatpush1.bf16.msra.mxu0 0
        %1046 = vmatprep.subr.bf16.mxu0 0
        %1047 = vmatpush1.bf16.msra.mxu0 0
        %1048 = vmatprep.subr.bf16.mxu0 0
        %1049 = vmatpush1.bf16.msra.mxu0 0
        %1050 = vmatprep.subr.bf16.mxu0 0
        %1051 = vmatpush1.bf16.msra.mxu0 0
        %1052 = vmatprep.mubr.bf16.mxu0 0
        %1053 = vmatmul.mubr.bf16.gmra.mrb[0].mxu0 %v911
        %v1054 = vpop.f32.mrb[0].mxu0
        %v1055 = vadd.f32 %v933, %v1054
        %v1056 = vpop.f32.mrb[0].mxu0
        %v1057 = vadd.f32 %v937, %v1056
        %v1058 = vpop.f32.mrb[0].mxu0
        %v1059 = vadd.f32 %v933, %v1058
        %v1060 = vpop.f32.mrb[0].mxu0
        %v1061 = vadd.f32 %v937, %v1060
        %1062 = vdwg.mxu0
        %v1063 = vmul.f32 %v1057, 0.5
        %v1064 = vmul.f32 %v1061, 0.5
        %v1065 = vmul.f32 %v1063, 1.442695
        %v1066 = vpow.pop %v1065
        %v1067 = vmul.f32 %v1064, 1.442695
        %v1068 = vpow.pop %v1067
        %v1069 = vmul.f32 %v674, %v1066
        %v1070 = vmul.f32 %v675, %v1068
        %v1071 = vadd.f32 %v1055, %v1069
        %v1072 = vadd.f32 %v1059, %v1070
        %v1073 = vpack.c.bf16 %v1072, %v1071
        %v1076 = vunpack.c.l.b16 %v672
        %v1077 = vunpack.c.l.b16 %v673
        %v1078 = vpack.c.b16 %v1077, %v1076
        %v1080 = vld [vmem:[%s6] sm:$0xf]
        %v1081 = vld [vmem:[%s6 + $0x4] sm:$0xf]
        %v1082 = vld [vmem:[%s6 + $0x8] sm:$0xf]
        %v1083 = vld [vmem:[%s6 + $0xc] sm:$0xf]
        %v1084 = vld [vmem:[%s6 + $0x10] sm:$0xf]
        %v1085 = vld [vmem:[%s6 + $0x14] sm:$0xf]
        %v1086 = vld [vmem:[%s6 + $0x18] sm:$0xf]
        %v1087 = vld [vmem:[%s6 + $0x1c] sm:$0xf]
        %v1088 = vld [vmem:[%s6 + $0x20] sm:$0xf]
        %v1089 = vld [vmem:[%s6 + $0x24] sm:$0xf]
        %v1090 = vld [vmem:[%s6 + $0x28] sm:$0xf]
        %v1091 = vld [vmem:[%s6 + $0x2c] sm:$0xf]
        %v1092 = vld [vmem:[%s6 + $0x30] sm:$0xf]
        %v1093 = vld [vmem:[%s6 + $0x34] sm:$0xf]
        %v1094 = vld [vmem:[%s6 + $0x38] sm:$0xf]
        %v1095 = vld [vmem:[%s6 + $0x3c] sm:$0xf]
        %v1096 = vld [vmem:[%s6 + $0x40] sm:$0xf]
        %v1097 = vld [vmem:[%s6 + $0x44] sm:$0xf]
        %v1098 = vld [vmem:[%s6 + $0x48] sm:$0xf]
        %v1099 = vld [vmem:[%s6 + $0x4c] sm:$0xf]
        %v1100 = vld [vmem:[%s6 + $0x50] sm:$0xf]
        %v1101 = vld [vmem:[%s6 + $0x54] sm:$0xf]
        %v1102 = vld [vmem:[%s6 + $0x58] sm:$0xf]
        %v1103 = vld [vmem:[%s6 + $0x5c] sm:$0xf]
        %v1104 = vld [vmem:[%s6 + $0x60] sm:$0xf]
        %v1105 = vld [vmem:[%s6 + $0x64] sm:$0xf]
        %v1106 = vld [vmem:[%s6 + $0x68] sm:$0xf]
        %v1107 = vld [vmem:[%s6 + $0x6c] sm:$0xf]
        %v1108 = vld [vmem:[%s6 + $0x70] sm:$0xf]
        %v1109 = vld [vmem:[%s6 + $0x74] sm:$0xf]
        %v1110 = vld [vmem:[%s6 + $0x78] sm:$0xf]
        %v1111 = vld [vmem:[%s6 + $0x7c] sm:$0xf]
        %v1112 = vld [vmem:[#allocation9] sm:$0x1]
        %v1114 = vlaneseq
        %v1115 = vshrl.u32 %v1114, 7
        %v1116 = vsub.s32 0, %v1115
        %v1117 = vrot.slane %v1112, %v1116
        %v1151 = vunpack.c.l.b16 %v1080
        %v1152 = vunpack.c.l.b16 %v1081
        %v1153 = vunpack.c.l.b16 %v1082
        %v1154 = vunpack.c.l.b16 %v1083
        %v1155 = vunpack.c.l.b16 %v1084
        %v1156 = vunpack.c.l.b16 %v1085
        %v1157 = vunpack.c.l.b16 %v1086
        %v1158 = vunpack.c.l.b16 %v1087
        %v1159 = vunpack.c.l.b16 %v1088
        %v1160 = vunpack.c.l.b16 %v1089
        %v1161 = vunpack.c.l.b16 %v1090
        %v1162 = vunpack.c.l.b16 %v1091
        %v1163 = vunpack.c.l.b16 %v1092
        %v1164 = vunpack.c.l.b16 %v1093
        %v1165 = vunpack.c.l.b16 %v1094
        %v1166 = vunpack.c.l.b16 %v1095
        %v1167 = vunpack.c.l.b16 %v1096
        %v1168 = vunpack.c.l.b16 %v1097
        %v1169 = vunpack.c.l.b16 %v1098
        %v1170 = vunpack.c.l.b16 %v1099
        %v1171 = vunpack.c.l.b16 %v1100
        %v1172 = vunpack.c.l.b16 %v1101
        %v1173 = vunpack.c.l.b16 %v1102
        %v1174 = vunpack.c.l.b16 %v1103
        %v1175 = vunpack.c.l.b16 %v1104
        %v1176 = vunpack.c.l.b16 %v1105
        %v1177 = vunpack.c.l.b16 %v1106
        %v1178 = vunpack.c.l.b16 %v1107
        %v1179 = vunpack.c.l.b16 %v1108
        %v1180 = vunpack.c.l.b16 %v1109
        %v1181 = vunpack.c.l.b16 %v1110
        %v1182 = vunpack.c.l.b16 %v1111
        %v1183 = vpack.c.b16 %v1152, %v1151
        %v1184 = vpack.c.b16 %v1154, %v1153
        %v1185 = vpack.c.b16 %v1156, %v1155
        %v1186 = vpack.c.b16 %v1158, %v1157
        %v1187 = vpack.c.b16 %v1160, %v1159
        %v1188 = vpack.c.b16 %v1162, %v1161
        %v1189 = vpack.c.b16 %v1164, %v1163
        %v1190 = vpack.c.b16 %v1166, %v1165
        %v1191 = vpack.c.b16 %v1168, %v1167
        %v1192 = vpack.c.b16 %v1170, %v1169
        %v1193 = vpack.c.b16 %v1172, %v1171
        %v1194 = vpack.c.b16 %v1174, %v1173
        %v1195 = vpack.c.b16 %v1176, %v1175
        %v1196 = vpack.c.b16 %v1178, %v1177
        %v1197 = vpack.c.b16 %v1180, %v1179
        %v1198 = vpack.c.b16 %v1182, %v1181
        %1215 = vmatprep.subr.bf16.mxu0 0
        %1216 = vmatpush1.bf16.msra.mxu0 %v1183
        %1217 = vmatprep.subr.bf16.mxu0 0
        %1218 = vmatpush1.bf16.msra.mxu0 %v1184
        %1219 = vmatprep.subr.bf16.mxu0 0
        %1220 = vmatpush1.bf16.msra.mxu0 %v1185
        %1221 = vmatprep.subr.bf16.mxu0 0
        %1222 = vmatpush1.bf16.msra.mxu0 %v1186
        %1223 = vmatprep.subr.bf16.mxu0 0
        %1224 = vmatpush1.bf16.msra.mxu0 %v1187
        %1225 = vmatprep.subr.bf16.mxu0 0
        %1226 = vmatpush1.bf16.msra.mxu0 %v1188
        %1227 = vmatprep.subr.bf16.mxu0 0
        %1228 = vmatpush1.bf16.msra.mxu0 %v1189
        %1229 = vmatprep.subr.bf16.mxu0 0
        %1230 = vmatpush1.bf16.msra.mxu0 %v1190
        %1231 = vmatprep.subr.bf16.mxu0 0
        %1232 = vmatpush1.bf16.msra.mxu0 %v1191
        %1233 = vmatprep.subr.bf16.mxu0 0
        %1234 = vmatpush1.bf16.msra.mxu0 %v1192
        %1235 = vmatprep.subr.bf16.mxu0 0
        %1236 = vmatpush1.bf16.msra.mxu0 %v1193
        %1237 = vmatprep.subr.bf16.mxu0 0
        %1238 = vmatpush1.bf16.msra.mxu0 %v1194
        %1239 = vmatprep.subr.bf16.mxu0 0
        %1240 = vmatpush1.bf16.msra.mxu0 %v1195
        %1241 = vmatprep.subr.bf16.mxu0 0
        %1242 = vmatpush1.bf16.msra.mxu0 %v1196
        %1243 = vmatprep.subr.bf16.mxu0 0
        %1244 = vmatpush1.bf16.msra.mxu0 %v1197
        %1245 = vmatprep.subr.bf16.mxu0 0
        %1246 = vmatpush1.bf16.msra.mxu0 %v1198
        %1247 = vmatprep.mubr.bf16.mxu0 %v1078
        %1248 = vmatmul.mubr.bf16.gmra.mrb[0].mxu0 %v1073
        %v1249 = vpop.f32.mrb[0].mxu0
        %v1250 = vadd.f32 %v1117, %v1249
        %v1251 = vpop.f32.mrb[0].mxu0
        %v1252 = vpop.f32.mrb[0].mxu0
        %v1253 = vadd.f32 %v1117, %v1252
        %v1254 = vpop.f32.mrb[0].mxu0
        %1255 = vdwg.mxu0
        %v1256 = vmax.f32 %v1250, 0.0
        %v1257 = vmax.f32 %v1253, 0.0
        %v1258 = vpack.c.bf16 %v1257, %v1256
        %v1259 = vld [vmem:[#allocation6] sm:$0xf]
        %v1260 = vld [vmem:[#allocation6 + $0x4] sm:$0xf]
        %v1261 = vld [vmem:[#allocation6 + $0x8] sm:$0xf]
        %v1262 = vld [vmem:[#allocation6 + $0xc] sm:$0xf]
        %v1263 = vld [vmem:[#allocation6 + $0x10] sm:$0xf]
        %v1264 = vld [vmem:[#allocation6 + $0x14] sm:$0xf]
        %v1265 = vld [vmem:[#allocation6 + $0x18] sm:$0xf]
        %v1266 = vld [vmem:[#allocation6 + $0x1c] sm:$0xf]
        %v1267 = vld [vmem:[#allocation6 + $0x20] sm:$0xf]
        %v1268 = vld [vmem:[#allocation6 + $0x24] sm:$0xf]
        %v1269 = vld [vmem:[#allocation6 + $0x28] sm:$0xf]
        %v1270 = vld [vmem:[#allocation6 + $0x2c] sm:$0xf]
        %v1271 = vld [vmem:[#allocation6 + $0x30] sm:$0xf]
        %v1272 = vld [vmem:[#allocation6 + $0x34] sm:$0xf]
        %v1273 = vld [vmem:[#allocation6 + $0x38] sm:$0xf]
        %v1274 = vld [vmem:[#allocation6 + $0x3c] sm:$0xf]
        %v1275 = vld [vmem:[#allocation10] sm:$0x1]
        %v1277 = vlaneseq
        %v1278 = vshrl.u32 %v1277, 7
        %v1279 = vsub.s32 0, %v1278
        %v1280 = vrot.slane %v1275, %v1279
        %v1298 = vunpack.c.l.b16 %v1259
        %v1299 = vunpack.c.l.b16 %v1260
        %v1300 = vunpack.c.l.b16 %v1261
        %v1301 = vunpack.c.l.b16 %v1262
        %v1302 = vunpack.c.l.b16 %v1263
        %v1303 = vunpack.c.l.b16 %v1264
        %v1304 = vunpack.c.l.b16 %v1265
        %v1305 = vunpack.c.l.b16 %v1266
        %v1306 = vunpack.c.l.b16 %v1267
        %v1307 = vunpack.c.l.b16 %v1268
        %v1308 = vunpack.c.l.b16 %v1269
        %v1309 = vunpack.c.l.b16 %v1270
        %v1310 = vunpack.c.l.b16 %v1271
        %v1311 = vunpack.c.l.b16 %v1272
        %v1312 = vunpack.c.l.b16 %v1273
        %v1313 = vunpack.c.l.b16 %v1274
        %v1314 = vpack.c.b16 %v1299, %v1298
        %v1315 = vpack.c.b16 %v1301, %v1300
        %v1316 = vpack.c.b16 %v1303, %v1302
        %v1317 = vpack.c.b16 %v1305, %v1304
        %v1318 = vpack.c.b16 %v1307, %v1306
        %v1319 = vpack.c.b16 %v1309, %v1308
        %v1320 = vpack.c.b16 %v1311, %v1310
        %v1321 = vpack.c.b16 %v1313, %v1312
        %1330 = vmatprep.subr.bf16.mxu0 0
        %1331 = vmatpush1.bf16.msra.mxu0 %v1314
        %1332 = vmatprep.subr.bf16.mxu0 0
        %1333 = vmatpush1.bf16.msra.mxu0 %v1315
        %1334 = vmatprep.subr.bf16.mxu0 0
        %1335 = vmatpush1.bf16.msra.mxu0 %v1316
        %1336 = vmatprep.subr.bf16.mxu0 0
        %1337 = vmatpush1.bf16.msra.mxu0 %v1317
        %1338 = vmatprep.subr.bf16.mxu0 0
        %1339 = vmatpush1.bf16.msra.mxu0 %v1318
        %1340 = vmatprep.subr.bf16.mxu0 0
        %1341 = vmatpush1.bf16.msra.mxu0 %v1319
        %1342 = vmatprep.subr.bf16.mxu0 0
        %1343 = vmatpush1.bf16.msra.mxu0 %v1320
        %1344 = vmatprep.subr.bf16.mxu0 0
        %1345 = vmatpush1.bf16.msra.mxu0 %v1321
        %1346 = vmatprep.subr.bf16.mxu0 0
        %1347 = vmatpush1.bf16.msra.mxu0 0
        %1348 = vmatprep.subr.bf16.mxu0 0
        %1349 = vmatpush1.bf16.msra.mxu0 0
        %1350 = vmatprep.subr.bf16.mxu0 0
        %1351 = vmatpush1.bf16.msra.mxu0 0
        %1352 = vmatprep.subr.bf16.mxu0 0
        %1353 = vmatpush1.bf16.msra.mxu0 0
        %1354 = vmatprep.subr.bf16.mxu0 0
        %1355 = vmatpush1.bf16.msra.mxu0 0
        %1356 = vmatprep.subr.bf16.mxu0 0
        %1357 = vmatpush1.bf16.msra.mxu0 0
        %1358 = vmatprep.subr.bf16.mxu0 0
        %1359 = vmatpush1.bf16.msra.mxu0 0
        %1360 = vmatprep.subr.bf16.mxu0 0
        %1361 = vmatpush1.bf16.msra.mxu0 0
        %1362 = vmatprep.mubr.bf16.mxu0 0
        %1363 = vmatmul.mubr.bf16.gmra.mrb[0].mxu0 %v1258
        %v1364 = vpop.f32.mrb[0].mxu0
        %v1365 = vadd.f32 %v1280, %v1364
        %v1366 = vpop.f32.mrb[0].mxu0
        %v1367 = vpop.f32.mrb[0].mxu0
        %v1368 = vadd.f32 %v1280, %v1367
        %v1369 = vpop.f32.mrb[0].mxu0
        %1370 = vdwg.mxu0
        %v1371 = vmax.f32 %v1365, 0.0
        %v1372 = vmax.f32 %v1368, 0.0
        %v1373 = vpack.c.bf16 %v1372, %v1371
        %v1374 = vld [vmem:[#allocation7] sm:$0xf]
        %v1375 = vld [vmem:[#allocation7 + $0x4] sm:$0xf]
        %v1376 = vld [vmem:[#allocation7 + $0x8] sm:$0xf]
        %v1377 = vld [vmem:[#allocation7 + $0xc] sm:$0xf]
        %v1378 = vld [vmem:[#allocation7 + $0x10] sm:$0xf]
        %v1379 = vld [vmem:[#allocation7 + $0x14] sm:$0xf]
        %v1380 = vld [vmem:[#allocation7 + $0x18] sm:$0xf]
        %v1381 = vld [vmem:[#allocation7 + $0x1c] sm:$0xf]
        %v1382 = vld [vmem:[#allocation7 + $0x20] sm:$0xf]
        %v1383 = vld [vmem:[#allocation7 + $0x24] sm:$0xf]
        %v1384 = vld [vmem:[#allocation7 + $0x28] sm:$0xf]
        %v1385 = vld [vmem:[#allocation7 + $0x2c] sm:$0xf]
        %v1386 = vld [vmem:[#allocation7 + $0x30] sm:$0xf]
        %v1387 = vld [vmem:[#allocation7 + $0x34] sm:$0xf]
        %v1388 = vld [vmem:[#allocation7 + $0x38] sm:$0xf]
        %v1389 = vld [vmem:[#allocation7 + $0x3c] sm:$0xf]
        %v1390 = vld [vmem:[%s14] sm:$0x1]
        %v1392 = vlaneseq
        %v1393 = vshrl.u32 %v1392, 7
        %v1394 = vsub.s32 0, %v1393
        %v1395 = vrot.slane %v1390, %v1394
        %v1413 = vunpack.c.l.b16 %v1374
        %v1414 = vunpack.c.l.b16 %v1375
        %v1415 = vunpack.c.l.b16 %v1376
        %v1416 = vunpack.c.l.b16 %v1377
        %v1417 = vunpack.c.l.b16 %v1378
        %v1418 = vunpack.c.l.b16 %v1379
        %v1419 = vunpack.c.l.b16 %v1380
        %v1420 = vunpack.c.l.b16 %v1381
        %v1421 = vunpack.c.l.b16 %v1382
        %v1422 = vunpack.c.l.b16 %v1383
        %v1423 = vunpack.c.l.b16 %v1384
        %v1424 = vunpack.c.l.b16 %v1385
        %v1425 = vunpack.c.l.b16 %v1386
        %v1426 = vunpack.c.l.b16 %v1387
        %v1427 = vunpack.c.l.b16 %v1388
        %v1428 = vunpack.c.l.b16 %v1389
        %v1429 = vpack.c.b16 %v1414, %v1413
        %v1430 = vpack.c.b16 %v1416, %v1415
        %v1431 = vpack.c.b16 %v1418, %v1417
        %v1432 = vpack.c.b16 %v1420, %v1419
        %v1433 = vpack.c.b16 %v1422, %v1421
        %v1434 = vpack.c.b16 %v1424, %v1423
        %v1435 = vpack.c.b16 %v1426, %v1425
        %v1436 = vpack.c.b16 %v1428, %v1427
        %1445 = vmatprep.subr.bf16.mxu0 0
        %1446 = vmatpush1.bf16.msra.mxu0 %v1429
        %1447 = vmatprep.subr.bf16.mxu0 0
        %1448 = vmatpush1.bf16.msra.mxu0 %v1430
        %1449 = vmatprep.subr.bf16.mxu0 0
        %1450 = vmatpush1.bf16.msra.mxu0 %v1431
        %1451 = vmatprep.subr.bf16.mxu0 0
        %1452 = vmatpush1.bf16.msra.mxu0 %v1432
        %1453 = vmatprep.subr.bf16.mxu0 0
        %1454 = vmatpush1.bf16.msra.mxu0 %v1433
        %1455 = vmatprep.subr.bf16.mxu0 0
        %1456 = vmatpush1.bf16.msra.mxu0 %v1434
        %1457 = vmatprep.subr.bf16.mxu0 0
        %1458 = vmatpush1.bf16.msra.mxu0 %v1435
        %1459 = vmatprep.subr.bf16.mxu0 0
        %1460 = vmatpush1.bf16.msra.mxu0 %v1436
        %1461 = vmatprep.subr.bf16.mxu0 0
        %1462 = vmatpush1.bf16.msra.mxu0 0
        %1463 = vmatprep.subr.bf16.mxu0 0
        %1464 = vmatpush1.bf16.msra.mxu0 0
        %1465 = vmatprep.subr.bf16.mxu0 0
        %1466 = vmatpush1.bf16.msra.mxu0 0
        %1467 = vmatprep.subr.bf16.mxu0 0
        %1468 = vmatpush1.bf16.msra.mxu0 0
        %1469 = vmatprep.subr.bf16.mxu0 0
        %1470 = vmatpush1.bf16.msra.mxu0 0
        %1471 = vmatprep.subr.bf16.mxu0 0
        %1472 = vmatpush1.bf16.msra.mxu0 0
        %1473 = vmatprep.subr.bf16.mxu0 0
        %1474 = vmatpush1.bf16.msra.mxu0 0
        %1475 = vmatprep.subr.bf16.mxu0 0
        %1476 = vmatpush1.bf16.msra.mxu0 0
        %1477 = vmatprep.mubr.bf16.mxu0 0
        %1478 = vmatmul.mubr.bf16.gmra.mrb[0].mxu0 %v1373
        %v1479 = vpop.f32.mrb[0].mxu0
        %v1480 = vadd.f32 %v1395, %v1479
        %v1481 = vpop.f32.mrb[0].mxu0
        %v1482 = vpop.f32.mrb[0].mxu0
        %v1483 = vadd.f32 %v1395, %v1482
        %v1484 = vpop.f32.mrb[0].mxu0
        %1485 = vdwg.mxu0
        %1486 = vst [vmem:[%s660] sm:$0xff] %v1480
        %1487 = vst [vmem:[%s660 + $0x8] sm:$0xff] %v1483
        %1488 = vst [vmem:[%s667] sm:$0xff] %v1055
        %1489 = vst [vmem:[%s667 + $0x8] sm:$0xff] %v1057
        %1490 = vst [vmem:[%s667 + $0x10] sm:$0xff] %v1059
        %1491 = vst [vmem:[%s667 + $0x18] sm:$0xff] %v1061
        %s1492 = smul.u32 2, %s32
        %p1493 = scmp.lt.s32.totalorder %s1492, 3
        %s1494 = scalar_select %p1493, %s1492, 3
        %s1495 = smul.addr %s1494, 8
        %s1496 = scalar_lea.vmem %s15, %s1495
        %s1497 = smul.u32 2, %s32
        %p1498 = scmp.lt.s32.totalorder %s1497, 3
        %s1499 = scalar_select %p1498, %s1497, 3
        %s1500 = smul.addr %s1499, 2
        %s1501 = smul.addr %s1500, 8
        %s1502 = scalar_lea.vmem %s16, %s1501
        // Predicated region
        $region105: #{_cvae_forward_impl.1} parent=79 // pred_check
          %p1503 = pneg %p380
        $region106: #{_cvae_forward_impl.1} parent=79 // pred_check_branch
          %1505 = sbr.rel (%p1503) target = $region108
        $region107: #{_cvae_forward_impl.1} parent=79 // pred_region
          %s1506 = smul.u32 2, %s32
        $region108: #{_cvae_forward_impl.1} parent=79 // pred_fallthru
          _
        // Predicated region
        $region109: #{_cvae_forward_impl.1} parent=79 // pred_check
          %p1507 = pneg %p406
        $region110: #{_cvae_forward_impl.1} parent=79 // pred_check_branch
          %1509 = sbr.rel (%p1507) target = $region112
        $region111: #{_cvae_forward_impl.1} parent=79 // pred_region
          %s1510 = smul.u32 2, %s32
        $region112: #{_cvae_forward_impl.1} parent=79 // pred_fallthru
          _
      $region80: #{_cvae_forward_impl.1} parent=5 // pred_fallthru
        _
      %p1511 = scmp.le.s32.totalorder 2, %s27
      // Predicated region
      $region113: #{_cvae_forward_impl.1} parent=5 // pred_check
        %p1512 = pneg %p1511
      $region114: #{_cvae_forward_impl.1} parent=5 // pred_check_branch
        %1514 = sbr.rel (%p1512) target = $region116
      $region115: #{_cvae_forward_impl.1} parent=5 // pred_region
        %s1515 = ssub.s32 %s27, 2
        // Predicated region
        $region117: #{_cvae_forward_impl.1} parent=115 // pred_check
          %p1516 = pneg %p386
        $region118: #{_cvae_forward_impl.1} parent=115 // pred_check_branch
          %1518 = sbr.rel (%p1516) target = $region120
        $region119: #{_cvae_forward_impl.1} parent=115 // pred_region
          %s1519 = smul.u32 2, %s33
          %p1520 = scmp.lt.s32.totalorder %s1519, 3
          %s1521 = scalar_select %p1520, %s1519, 3
          %s1522 = smul.addr %s1521, 8
          %s1523 = scalar_lea.vmem %s15, %s1522
        $region120: #{_cvae_forward_impl.1} parent=115 // pred_fallthru
          _
        // Predicated region
        $region121: #{_cvae_forward_impl.1} parent=115 // pred_check
          %p1524 = pneg %p412
        $region122: #{_cvae_forward_impl.1} parent=115 // pred_check_branch
          %1526 = sbr.rel (%p1524) target = $region124
        $region123: #{_cvae_forward_impl.1} parent=115 // pred_region
          %s1527 = smul.u32 2, %s33
          %p1528 = scmp.lt.s32.totalorder %s1527, 3
          %s1529 = scalar_select %p1528, %s1527, 3
          %s1530 = smul.addr %s1529, 2
          %s1531 = smul.addr %s1530, 8
          %s1532 = scalar_lea.vmem %s16, %s1531
        $region124: #{_cvae_forward_impl.1} parent=115 // pred_fallthru
          _
      $region116: #{_cvae_forward_impl.1} parent=5 // pred_fallthru
        _
    $region6: #{_cvae_forward_impl.1} parent=1 // loop_footer
      %s31 = sadd.s32 1, %s27
    $region7: #{_cvae_forward_impl.1} parent=1 // loop_footer_branch
      %26 = sbr.rel target = $region3
    $region8: #{_cvae_forward_impl.1} parent=1 // loop_exit
      _
    %1533 = vsyncpa [#allocation3], 1
    %s1534 = scalar_lea.sflag [#allocation3], 1
    %1535 = vsyncpa %s1534, 1
    %1536 = vsyncpa [#allocation5], 1
    %1537 = vsyncpa [#allocation8], 1
    %1538 = vsyncpa [#allocation11], 1

</llo_original>
